<compile_context>
chip_gen: v6e
topology: v6e:2x2x1
jax: 0.10.0
libtpu: 0.0.40
codegen_flags: <defaults>
</compile_context>

<pallas_src>
import functools

import jax
import jax.numpy as jnp
from jax.experimental import pallas as pl
from jax.experimental.pallas import tpu as pltpu


def _resblock_kernel(x_ref, w1_ref, b1_ref, w2_ref, b2_ref,
                     out_ref, ap_ref, tap_ref, *,
                     K, H, W, C, Bt, res_scale, mxu_dtype):
    """One group of Bt images per grid step.

    x_ref   : (Bt, C, H*W)      input images, spatial dims flattened (lane-dense)
    w1/w2   : (C, K*K*C)        weights, (co, kh*K*C + kw*C + ci) order, mxu_dtype
    b1/b2   : (C, 1)            biases, f32
    out_ref : (Bt, C, H*W)
    ap_ref  : (C, H*W + 2*P)    VMEM scratch: one image with flat zero margins (f32)
    tap_ref : (K*K*C, Bt*H*W)   VMEM scratch: im2col tap matrix (mxu_dtype)
    """
    pad = K // 2
    HW = H * W
    P = pad * (W + 1)          # flat margin size: covers every (dh, dw) tap offset

    # Column (w) index of every flattened pixel; masks taps that would wrap
    # across a row boundary.  Built once, reused by both convs and all images.
    col = jax.lax.broadcasted_iota(jnp.int32, (1, HW), 1) % W
    col_ok = {}
    for dw in range(-pad, pad + 1):
        if dw < 0:
            col_ok[dw] = col >= -dw
        elif dw > 0:
            col_ok[dw] = col < (W - dw)

    # Zero only the tiny left/right margins; the interior of ap_ref is fully
    # overwritten before every use (megacore-safe: no program_id==0 guard).
    zeros_margin = jnp.zeros((C, P), ap_ref.dtype)
    ap_ref[:, 0:P] = zeros_margin
    ap_ref[:, P + HW:P + HW + P] = zeros_margin

    def build_taps(get_image):
        """Fill tap_ref from per-image (C, HW) f32 activations, in mxu_dtype."""
        for bi in range(Bt):
            a = get_image(bi)                                   # (C, HW) f32
            ap_ref[:, P:P + HW] = a
            for kh in range(K):
                dh = kh - pad
                for kw in range(K):
                    dw = kw - pad
                    t = kh * K + kw
                    d = dh * W + dw
                    if dh == 0 and dw == 0:
                        piece = a                               # centre tap: no reload
                    else:
                        piece = ap_ref[:, P + d:P + d + HW]     # shifted (C, HW)
                        if dw != 0:                             # mask row-wrap taps
                            piece = jnp.where(col_ok[dw], piece, 0.0)
                    tap_ref[t * C:(t + 1) * C, bi * HW:(bi + 1) * HW] = (
                        piece.astype(mxu_dtype))

    def conv(w_ref, b_ref):
        """One MXU contraction for all Bt images: (C, KKC) @ (KKC, Bt*HW)."""
        y = jnp.dot(w_ref[...], tap_ref[...],
                    preferred_element_type=jnp.float32)         # (C, Bt*HW) f32
        return y + b_ref[...]                                   # bias (C, 1)

    # conv1 + bias + ReLU.  Taps read straight from the resident input block,
    # so no f32 copy of x is held live across both convs.
    build_taps(lambda bi: x_ref[bi].astype(jnp.float32))
    h = jnp.maximum(conv(w1_ref, b1_ref), 0.0)                  # (C, Bt*HW)

    # conv2 + bias.
    build_taps(lambda bi: h[:, bi * HW:(bi + 1) * HW])
    y = conv(w2_ref, b2_ref)                                    # (C, Bt*HW)

    # Residual add; x is re-read from the VMEM input block (one extra vld,
    # frees registers during the store-bound im2col phase).
    for bi in range(Bt):
        out_ref[bi] = (x_ref[bi].astype(jnp.float32)
                       + jnp.float32(res_scale) * y[:, bi * HW:(bi + 1) * HW]
                       ).astype(out_ref.dtype)


def resblock_pallas(x_nchw, w1, b1, w2, b2, *, kernel_size=3, res_scale=1.0,
                    mxu_dtype=jnp.bfloat16, images_per_step=8):
    """x_nchw: (B, C, H, W).  w: (Cout, Cin, K, K) PyTorch OIHW layout.

    mxu_dtype controls the MXU operand dtype (weights + tap matrix); default
    bfloat16 with f32 accumulation (MXU is bf16-native on v5e/v6e/v7x).
    Pass jnp.float32 for bit-exact convolution arithmetic.
    """
    B, C, H, W = x_nchw.shape
    K = kernel_size
    assert K % 2 == 1, "SAME-padding here assumes an odd kernel size"
    pad = K // 2
    HW = H * W
    P = pad * (W + 1)

    # Pad channels up to a multiple of 8 sublanes.  Padded weight rows/cols and
    # bias entries are zero => padded channels compute exactly zero; sliced off
    # after the call.
    Cp = ((C + 7) // 8) * 8

    # Free (contiguous) reshape: keep NCHW, flatten spatial dims (lane-dense).
    x_flat = x_nchw.reshape(B, C, HW)
    if Cp != C:
        cpad = Cp - C
        x_flat = jnp.pad(x_flat, ((0, 0), (0, cpad), (0, 0)))
        w1 = jnp.pad(w1, ((0, cpad), (0, cpad), (0, 0), (0, 0)))
        w2 = jnp.pad(w2, ((0, cpad), (0, cpad), (0, 0), (0, 0)))
        b1 = jnp.pad(b1, ((0, cpad),))
        b2 = jnp.pad(b2, ((0, cpad),))

    # (Cout, Cin, Kh, Kw) -> (Cout, Kh*Kw*Cin), matching the (kh, kw, ci) tap
    # stacking order used inside the kernel.  Tiny one-off op.
    w1s = jnp.transpose(w1, (0, 2, 3, 1)).reshape(Cp, K * K * Cp).astype(mxu_dtype)
    w2s = jnp.transpose(w2, (0, 2, 3, 1)).reshape(Cp, K * K * Cp).astype(mxu_dtype)
    b1c = b1.reshape(Cp, 1).astype(jnp.float32)
    b2c = b2.reshape(Cp, 1).astype(jnp.float32)

    # Bt images per grid step: largest divisor of B <= images_per_step.
    cap = max(1, min(int(images_per_step), B))
    Bt = 1
    for cand in range(cap, 0, -1):
        if B % cand == 0:
            Bt = cand
            break

    kernel = functools.partial(_resblock_kernel, K=K, H=H, W=W, C=Cp, Bt=Bt,
                               res_scale=res_scale, mxu_dtype=mxu_dtype)

    out_flat = pl.pallas_call(
        kernel,
        out_shape=jax.ShapeDtypeStruct((B, Cp, HW), x_nchw.dtype),
        grid_spec=pltpu.PrefetchScalarGridSpec(
            num_scalar_prefetch=0,
            grid=(B // Bt,),                           # parallel -> both TCs on v7x
            in_specs=[
                pl.BlockSpec((Bt, Cp, HW), lambda g: (g, 0, 0)),
                pl.BlockSpec((Cp, K * K * Cp), lambda g: (0, 0)),
                pl.BlockSpec((Cp, 1), lambda g: (0, 0)),
                pl.BlockSpec((Cp, K * K * Cp), lambda g: (0, 0)),
                pl.BlockSpec((Cp, 1), lambda g: (0, 0)),
            ],
            out_specs=pl.BlockSpec((Bt, Cp, HW), lambda g: (g, 0, 0)),
            scratch_shapes=[
                pltpu.VMEM((Cp, HW + 2 * P), jnp.float32),     # margined activation
                pltpu.VMEM((K * K * Cp, Bt * HW), mxu_dtype),  # im2col tap matrix
            ],
        ),
        compiler_params=pltpu.CompilerParams(
            dimension_semantics=("parallel",)),
    )(x_flat, w1s, b1c, w2s, b2c)

    if Cp != C:
        out_flat = out_flat[:, :C, :]
    return out_flat.reshape(B, C, H, W)


def resblock_reference(x_nchw, w1, b1, w2, b2, *, res_scale=1.0):
    dn = ("NCHW", "OIHW", "NCHW")
    y = jax.lax.conv_general_dilated(x_nchw, w1, (1, 1), "SAME",
                                     dimension_numbers=dn)
    y = y + b1[None, :, None, None]
    y = jnp.maximum(y, 0.0)
    y = jax.lax.conv_general_dilated(y, w2, (1, 1), "SAME",
                                     dimension_numbers=dn)
    y = y + b2[None, :, None, None]
    return x_nchw + res_scale * y


if __name__ == "__main__":
    # Small shapes consistent with the module: batch=2, n_features=4, 16x16.
    B, C, H, W = 2, 4, 16, 16
    K = 3
    res_scale = 0.5

    key = jax.random.PRNGKey(0)
    kx, kw1, kb1, kw2, kb2 = jax.random.split(key, 5)
    x = jax.random.normal(kx, (B, C, H, W), dtype=jnp.float32)
    # Deterministic synthetic parameters (PyTorch Conv2d weight shape: OIHW).
    w1 = jax.random.normal(kw1, (C, C, K, K), dtype=jnp.float32) * 0.1
    b1 = jax.random.normal(kb1, (C,), dtype=jnp.float32) * 0.1
    w2 = jax.random.normal(kw2, (C, C, K, K), dtype=jnp.float32) * 0.1
    b2 = jax.random.normal(kb2, (C,), dtype=jnp.float32) * 0.1

    ref = jax.block_until_ready(
        resblock_reference(x, w1, b1, w2, b2, res_scale=res_scale))

    # f32 MXU-operand path (exact numerics).
    out_f32 = jax.block_until_ready(
        resblock_pallas(x, w1, b1, w2, b2, kernel_size=K, res_scale=res_scale,
                        mxu_dtype=jnp.float32))
    assert out_f32.shape == (B, C, H, W)
    assert jnp.allclose(out_f32, ref, atol=1e-4, rtol=1e-4), \
        f"f32 path: max abs err = {jnp.max(jnp.abs(out_f32 - ref))}"

    # Default bf16 MXU-operand path (f32 accumulation) -> looser tolerance.
    out_bf16 = jax.block_until_ready(
        resblock_pallas(x, w1, b1, w2, b2, kernel_size=K, res_scale=res_scale))
    assert out_bf16.shape == (B, C, H, W)
    assert jnp.allclose(out_bf16, ref, atol=5e-2, rtol=5e-2), \
        f"bf16 path: max abs err = {jnp.max(jnp.abs(out_bf16 - ref))}"

    print("KERNEL_OK")
</pallas_src>

<mosaic_0001>
module attributes {stable_mosaic.version = 11 : i64} {
  func.func @_resblock_kernel(%arg0: i32, %arg1: memref<2x8x256xf32, #tpu.memory_space<vmem>>, %arg2: memref<8x72xf32, #tpu.memory_space<vmem>>, %arg3: memref<8x1xf32, #tpu.memory_space<vmem>>, %arg4: memref<8x72xf32, #tpu.memory_space<vmem>>, %arg5: memref<8x1xf32, #tpu.memory_space<vmem>>, %arg6: memref<2x8x256xf32, #tpu.memory_space<vmem>>, %arg7: memref<8x290xf32, #tpu.memory_space<vmem>>, %arg8: memref<72x512xf32, #tpu.memory_space<vmem>>) attributes {dimension_semantics = [#tpu.dimension_semantics<parallel>], iteration_bounds = array<i64: 1>, scalar_prefetch = 0 : i64, scratch_operands = 2 : i64, tpu.core_type = #tpu.core_type<tc>, window_params = [{transform_indices = @transform_0, window_bounds = array<i64: 2, 8, 256>}, {pipeline_mode = #tpu.pipeline_mode<synchronous>, transform_indices = @transform_1, window_bounds = array<i64: 8, 72>}, {pipeline_mode = #tpu.pipeline_mode<synchronous>, transform_indices = @transform_2, window_bounds = array<i64: 8, 1>}, {pipeline_mode = #tpu.pipeline_mode<synchronous>, transform_indices = @transform_3, window_bounds = array<i64: 8, 72>}, {pipeline_mode = #tpu.pipeline_mode<synchronous>, transform_indices = @transform_4, window_bounds = array<i64: 8, 1>}, {transform_indices = @transform_5, window_bounds = array<i64: 2, 8, 256>}]} {
    %0 = tpu.iota {dimensions = array<i32: 1>} : vector<1x256xi32>
    %c16_i32 = arith.constant 16 : i32
    %c0_i32 = arith.constant 0 : i32
    %1 = arith.cmpi eq, %c16_i32, %c0_i32 : i32
    %c1_i32 = arith.constant 1 : i32
    %2 = arith.select %1, %c1_i32, %c16_i32 : i32
    %3 = vector.broadcast %2 : i32 to vector<1x256xi32>
    %4 = arith.remsi %0, %3 : vector<1x256xi32>
    %c0_i32_0 = arith.constant 0 : i32
    %5 = vector.broadcast %c0_i32_0 : i32 to vector<1x256xi32>
    %6 = arith.cmpi ne, %4, %5 : vector<1x256xi32>
    %c0_i32_1 = arith.constant 0 : i32
    %7 = vector.broadcast %c0_i32_1 : i32 to vector<1x256xi32>
    %8 = arith.cmpi slt, %4, %7 : vector<1x256xi32>
    %c0_i32_2 = arith.constant 0 : i32
    %9 = arith.cmpi slt, %2, %c0_i32_2 : i32
    %10 = vector.broadcast %9 : i1 to vector<1x256xi1>
    %11 = vector.broadcast %10 : vector<1x256xi1> to vector<1x256xi1>
    %12 = arith.xori %8, %11 : vector<1x256xi1>
    %13 = arith.andi %12, %6 : vector<1x256xi1>
    %14 = vector.broadcast %2 : i32 to vector<1x256xi32>
    %15 = arith.addi %4, %14 : vector<1x256xi32>
    %16 = arith.select %13, %15, %4 : vector<1x256xi1>, vector<1x256xi32>
    %c1_i32_3 = arith.constant 1 : i32
    %17 = vector.broadcast %c1_i32_3 : i32 to vector<1x256xi32>
    %18 = arith.cmpi sge, %16, %17 : vector<1x256xi32>
    %c15_i32 = arith.constant 15 : i32
    %19 = vector.broadcast %c15_i32 : i32 to vector<1x256xi32>
    %20 = arith.cmpi slt, %16, %19 : vector<1x256xi32>
    %cst = arith.constant 0.000000e+00 : f32
    %21 = vector.broadcast %cst : f32 to vector<8x17xf32>
    %c0 = arith.constant 0 : index
    %c0_4 = arith.constant 0 : index
    %22 = vector.load %arg7[%c0, %c0_4] : memref<8x290xf32, #tpu.memory_space<vmem>>, vector<8x17xf32>
    tpu.vector_store %arg7[%c0, %c0_4], %21 {strides = array<i32>} : memref<8x290xf32, #tpu.memory_space<vmem>>, vector<8x17xf32>,
    %c0_5 = arith.constant 0 : index
    %c273 = arith.constant 273 : index
    %23 = vector.load %arg7[%c0_5, %c273] : memref<8x290xf32, #tpu.memory_space<vmem>>, vector<8x17xf32>
    tpu.vector_store %arg7[%c0_5, %c273], %21 {strides = array<i32>} : memref<8x290xf32, #tpu.memory_space<vmem>>, vector<8x17xf32>,
    %c0_6 = arith.constant 0 : index
    %c0_7 = arith.constant 0 : index
    %c0_8 = arith.constant 0 : index
    %24 = vector.load %arg1[%c0_6, %c0_7, %c0_8] : memref<2x8x256xf32, #tpu.memory_space<vmem>>, vector<1x8x256xf32>
    %25 = vector.shape_cast %24 : vector<1x8x256xf32> to vector<8x256xf32>
    %c0_9 = arith.constant 0 : index
    %c17 = arith.constant 17 : index
    %26 = vector.load %arg7[%c0_9, %c17] : memref<8x290xf32, #tpu.memory_space<vmem>>, vector<8x256xf32>
    tpu.vector_store %arg7[%c0_9, %c17], %25 {strides = array<i32>} : memref<8x290xf32, #tpu.memory_space<vmem>>, vector<8x256xf32>,
    %c0_10 = arith.constant 0 : index
    %c0_11 = arith.constant 0 : index
    %27 = vector.load %arg7[%c0_10, %c0_11] : memref<8x290xf32, #tpu.memory_space<vmem>>, vector<8x256xf32>
    %cst_12 = arith.constant 0.000000e+00 : f32
    %28 = vector.shape_cast %18 : vector<1x256xi1> to vector<1x256xi1>
    %29 = vector.broadcast %28 : vector<1x256xi1> to vector<8x256xi1>
    %30 = vector.broadcast %cst_12 : f32 to vector<8x256xf32>
    %31 = arith.select %29, %27, %30 : vector<8x256xi1>, vector<8x256xf32>
    %c0_13 = arith.constant 0 : index
    %c0_14 = arith.constant 0 : index
    %32 = vector.load %arg8[%c0_13, %c0_14] : memref<72x512xf32, #tpu.memory_space<vmem>>, vector<8x256xf32>
    tpu.vector_store %arg8[%c0_13, %c0_14], %31 {strides = array<i32>} : memref<72x512xf32, #tpu.memory_space<vmem>>, vector<8x256xf32>,
    %c0_15 = arith.constant 0 : index
    %c1 = arith.constant 1 : index
    %33 = vector.load %arg7[%c0_15, %c1] : memref<8x290xf32, #tpu.memory_space<vmem>>, vector<8x256xf32>
    %c8 = arith.constant 8 : index
    %c0_16 = arith.constant 0 : index
    %34 = vector.load %arg8[%c8, %c0_16] : memref<72x512xf32, #tpu.memory_space<vmem>>, vector<8x256xf32>
    tpu.vector_store %arg8[%c8, %c0_16], %33 {strides = array<i32>} : memref<72x512xf32, #tpu.memory_space<vmem>>, vector<8x256xf32>,
    %c0_17 = arith.constant 0 : index
    %c2 = arith.constant 2 : index
    %35 = vector.load %arg7[%c0_17, %c2] : memref<8x290xf32, #tpu.memory_space<vmem>>, vector<8x256xf32>
    %cst_18 = arith.constant 0.000000e+00 : f32
    %36 = vector.shape_cast %20 : vector<1x256xi1> to vector<1x256xi1>
    %37 = vector.broadcast %36 : vector<1x256xi1> to vector<8x256xi1>
    %38 = vector.broadcast %cst_18 : f32 to vector<8x256xf32>
    %39 = arith.select %37, %35, %38 : vector<8x256xi1>, vector<8x256xf32>
    %c16 = arith.constant 16 : index
    %c0_19 = arith.constant 0 : index
    %40 = vector.load %arg8[%c16, %c0_19] : memref<72x512xf32, #tpu.memory_space<vmem>>, vector<8x256xf32>
    tpu.vector_store %arg8[%c16, %c0_19], %39 {strides = array<i32>} : memref<72x512xf32, #tpu.memory_space<vmem>>, vector<8x256xf32>,
    %c0_20 = arith.constant 0 : index
    %c16_21 = arith.constant 16 : index
    %41 = vector.load %arg7[%c0_20, %c16_21] : memref<8x290xf32, #tpu.memory_space<vmem>>, vector<8x256xf32>
    %cst_22 = arith.constant 0.000000e+00 : f32
    %42 = vector.shape_cast %18 : vector<1x256xi1> to vector<1x256xi1>
    %43 = vector.broadcast %42 : vector<1x256xi1> to vector<8x256xi1>
    %44 = vector.broadcast %cst_22 : f32 to vector<8x256xf32>
    %45 = arith.select %43, %41, %44 : vector<8x256xi1>, vector<8x256xf32>
    %c24 = arith.constant 24 : index
    %c0_23 = arith.constant 0 : index
    %46 = vector.load %arg8[%c24, %c0_23] : memref<72x512xf32, #tpu.memory_space<vmem>>, vector<8x256xf32>
    tpu.vector_store %arg8[%c24, %c0_23], %45 {strides = array<i32>} : memref<72x512xf32, #tpu.memory_space<vmem>>, vector<8x256xf32>,
    %c32 = arith.constant 32 : index
    %c0_24 = arith.constant 0 : index
    %47 = vector.load %arg8[%c32, %c0_24] : memref<72x512xf32, #tpu.memory_space<vmem>>, vector<8x256xf32>
    tpu.vector_store %arg8[%c32, %c0_24], %25 {strides = array<i32>} : memref<72x512xf32, #tpu.memory_space<vmem>>, vector<8x256xf32>,
    %c0_25 = arith.constant 0 : index
    %c18 = arith.constant 18 : index
    %48 = vector.load %arg7[%c0_25, %c18] : memref<8x290xf32, #tpu.memory_space<vmem>>, vector<8x256xf32>
    %cst_26 = arith.constant 0.000000e+00 : f32
    %49 = vector.shape_cast %20 : vector<1x256xi1> to vector<1x256xi1>
    %50 = vector.broadcast %49 : vector<1x256xi1> to vector<8x256xi1>
    %51 = vector.broadcast %cst_26 : f32 to vector<8x256xf32>
    %52 = arith.select %50, %48, %51 : vector<8x256xi1>, vector<8x256xf32>
    %c40 = arith.constant 40 : index
    %c0_27 = arith.constant 0 : index
    %53 = vector.load %arg8[%c40, %c0_27] : memref<72x512xf32, #tpu.memory_space<vmem>>, vector<8x256xf32>
    tpu.vector_store %arg8[%c40, %c0_27], %52 {strides = array<i32>} : memref<72x512xf32, #tpu.memory_space<vmem>>, vector<8x256xf32>,
    %c0_28 = arith.constant 0 : index
    %c32_29 = arith.constant 32 : index
    %54 = vector.load %arg7[%c0_28, %c32_29] : memref<8x290xf32, #tpu.memory_space<vmem>>, vector<8x256xf32>
    %cst_30 = arith.constant 0.000000e+00 : f32
    %55 = vector.shape_cast %18 : vector<1x256xi1> to vector<1x256xi1>
    %56 = vector.broadcast %55 : vector<1x256xi1> to vector<8x256xi1>
    %57 = vector.broadcast %cst_30 : f32 to vector<8x256xf32>
    %58 = arith.select %56, %54, %57 : vector<8x256xi1>, vector<8x256xf32>
    %c48 = arith.constant 48 : index
    %c0_31 = arith.constant 0 : index
    %59 = vector.load %arg8[%c48, %c0_31] : memref<72x512xf32, #tpu.memory_space<vmem>>, vector<8x256xf32>
    tpu.vector_store %arg8[%c48, %c0_31], %58 {strides = array<i32>} : memref<72x512xf32, #tpu.memory_space<vmem>>, vector<8x256xf32>,
    %c0_32 = arith.constant 0 : index
    %c33 = arith.constant 33 : index
    %60 = vector.load %arg7[%c0_32, %c33] : memref<8x290xf32, #tpu.memory_space<vmem>>, vector<8x256xf32>
    %c56 = arith.constant 56 : index
    %c0_33 = arith.constant 0 : index
    %61 = vector.load %arg8[%c56, %c0_33] : memref<72x512xf32, #tpu.memory_space<vmem>>, vector<8x256xf32>
    tpu.vector_store %arg8[%c56, %c0_33], %60 {strides = array<i32>} : memref<72x512xf32, #tpu.memory_space<vmem>>, vector<8x256xf32>,
    %c0_34 = arith.constant 0 : index
    %c34 = arith.constant 34 : index
    %62 = vector.load %arg7[%c0_34, %c34] : memref<8x290xf32, #tpu.memory_space<vmem>>, vector<8x256xf32>
    %cst_35 = arith.constant 0.000000e+00 : f32
    %63 = vector.shape_cast %20 : vector<1x256xi1> to vector<1x256xi1>
    %64 = vector.broadcast %63 : vector<1x256xi1> to vector<8x256xi1>
    %65 = vector.broadcast %cst_35 : f32 to vector<8x256xf32>
    %66 = arith.select %64, %62, %65 : vector<8x256xi1>, vector<8x256xf32>
    %c64 = arith.constant 64 : index
    %c0_36 = arith.constant 0 : index
    %67 = vector.load %arg8[%c64, %c0_36] : memref<72x512xf32, #tpu.memory_space<vmem>>, vector<8x256xf32>
    tpu.vector_store %arg8[%c64, %c0_36], %66 {strides = array<i32>} : memref<72x512xf32, #tpu.memory_space<vmem>>, vector<8x256xf32>,
    %c1_37 = arith.constant 1 : index
    %c0_38 = arith.constant 0 : index
    %c0_39 = arith.constant 0 : index
    %68 = vector.load %arg1[%c1_37, %c0_38, %c0_39] : memref<2x8x256xf32, #tpu.memory_space<vmem>>, vector<1x8x256xf32>
    %69 = vector.shape_cast %68 : vector<1x8x256xf32> to vector<8x256xf32>
    %c0_40 = arith.constant 0 : index
    %c17_41 = arith.constant 17 : index
    %70 = vector.load %arg7[%c0_40, %c17_41] : memref<8x290xf32, #tpu.memory_space<vmem>>, vector<8x256xf32>
    tpu.vector_store %arg7[%c0_40, %c17_41], %69 {strides = array<i32>} : memref<8x290xf32, #tpu.memory_space<vmem>>, vector<8x256xf32>,
    %c0_42 = arith.constant 0 : index
    %c0_43 = arith.constant 0 : index
    %71 = vector.load %arg7[%c0_42, %c0_43] : memref<8x290xf32, #tpu.memory_space<vmem>>, vector<8x256xf32>
    %cst_44 = arith.constant 0.000000e+00 : f32
    %72 = vector.shape_cast %18 : vector<1x256xi1> to vector<1x256xi1>
    %73 = vector.broadcast %72 : vector<1x256xi1> to vector<8x256xi1>
    %74 = vector.broadcast %cst_44 : f32 to vector<8x256xf32>
    %75 = arith.select %73, %71, %74 : vector<8x256xi1>, vector<8x256xf32>
    %c0_45 = arith.constant 0 : index
    %c256 = arith.constant 256 : index
    %76 = vector.load %arg8[%c0_45, %c256] : memref<72x512xf32, #tpu.memory_space<vmem>>, vector<8x256xf32>
    tpu.vector_store %arg8[%c0_45, %c256], %75 {strides = array<i32>} : memref<72x512xf32, #tpu.memory_space<vmem>>, vector<8x256xf32>,
    %c0_46 = arith.constant 0 : index
    %c1_47 = arith.constant 1 : index
    %77 = vector.load %arg7[%c0_46, %c1_47] : memref<8x290xf32, #tpu.memory_space<vmem>>, vector<8x256xf32>
    %c8_48 = arith.constant 8 : index
    %c256_49 = arith.constant 256 : index
    %78 = vector.load %arg8[%c8_48, %c256_49] : memref<72x512xf32, #tpu.memory_space<vmem>>, vector<8x256xf32>
    tpu.vector_store %arg8[%c8_48, %c256_49], %77 {strides = array<i32>} : memref<72x512xf32, #tpu.memory_space<vmem>>, vector<8x256xf32>,
    %c0_50 = arith.constant 0 : index
    %c2_51 = arith.constant 2 : index
    %79 = vector.load %arg7[%c0_50, %c2_51] : memref<8x290xf32, #tpu.memory_space<vmem>>, vector<8x256xf32>
    %cst_52 = arith.constant 0.000000e+00 : f32
    %80 = vector.shape_cast %20 : vector<1x256xi1> to vector<1x256xi1>
    %81 = vector.broadcast %80 : vector<1x256xi1> to vector<8x256xi1>
    %82 = vector.broadcast %cst_52 : f32 to vector<8x256xf32>
    %83 = arith.select %81, %79, %82 : vector<8x256xi1>, vector<8x256xf32>
    %c16_53 = arith.constant 16 : index
    %c256_54 = arith.constant 256 : index
    %84 = vector.load %arg8[%c16_53, %c256_54] : memref<72x512xf32, #tpu.memory_space<vmem>>, vector<8x256xf32>
    tpu.vector_store %arg8[%c16_53, %c256_54], %83 {strides = array<i32>} : memref<72x512xf32, #tpu.memory_space<vmem>>, vector<8x256xf32>,
    %c0_55 = arith.constant 0 : index
    %c16_56 = arith.constant 16 : index
    %85 = vector.load %arg7[%c0_55, %c16_56] : memref<8x290xf32, #tpu.memory_space<vmem>>, vector<8x256xf32>
    %cst_57 = arith.constant 0.000000e+00 : f32
    %86 = vector.shape_cast %18 : vector<1x256xi1> to vector<1x256xi1>
    %87 = vector.broadcast %86 : vector<1x256xi1> to vector<8x256xi1>
    %88 = vector.broadcast %cst_57 : f32 to vector<8x256xf32>
    %89 = arith.select %87, %85, %88 : vector<8x256xi1>, vector<8x256xf32>
    %c24_58 = arith.constant 24 : index
    %c256_59 = arith.constant 256 : index
    %90 = vector.load %arg8[%c24_58, %c256_59] : memref<72x512xf32, #tpu.memory_space<vmem>>, vector<8x256xf32>
    tpu.vector_store %arg8[%c24_58, %c256_59], %89 {strides = array<i32>} : memref<72x512xf32, #tpu.memory_space<vmem>>, vector<8x256xf32>,
    %c32_60 = arith.constant 32 : index
    %c256_61 = arith.constant 256 : index
    %91 = vector.load %arg8[%c32_60, %c256_61] : memref<72x512xf32, #tpu.memory_space<vmem>>, vector<8x256xf32>
    tpu.vector_store %arg8[%c32_60, %c256_61], %69 {strides = array<i32>} : memref<72x512xf32, #tpu.memory_space<vmem>>, vector<8x256xf32>,
    %c0_62 = arith.constant 0 : index
    %c18_63 = arith.constant 18 : index
    %92 = vector.load %arg7[%c0_62, %c18_63] : memref<8x290xf32, #tpu.memory_space<vmem>>, vector<8x256xf32>
    %cst_64 = arith.constant 0.000000e+00 : f32
    %93 = vector.shape_cast %20 : vector<1x256xi1> to vector<1x256xi1>
    %94 = vector.broadcast %93 : vector<1x256xi1> to vector<8x256xi1>
    %95 = vector.broadcast %cst_64 : f32 to vector<8x256xf32>
    %96 = arith.select %94, %92, %95 : vector<8x256xi1>, vector<8x256xf32>
    %c40_65 = arith.constant 40 : index
    %c256_66 = arith.constant 256 : index
    %97 = vector.load %arg8[%c40_65, %c256_66] : memref<72x512xf32, #tpu.memory_space<vmem>>, vector<8x256xf32>
    tpu.vector_store %arg8[%c40_65, %c256_66], %96 {strides = array<i32>} : memref<72x512xf32, #tpu.memory_space<vmem>>, vector<8x256xf32>,
    %c0_67 = arith.constant 0 : index
    %c32_68 = arith.constant 32 : index
    %98 = vector.load %arg7[%c0_67, %c32_68] : memref<8x290xf32, #tpu.memory_space<vmem>>, vector<8x256xf32>
    %cst_69 = arith.constant 0.000000e+00 : f32
    %99 = vector.shape_cast %18 : vector<1x256xi1> to vector<1x256xi1>
    %100 = vector.broadcast %99 : vector<1x256xi1> to vector<8x256xi1>
    %101 = vector.broadcast %cst_69 : f32 to vector<8x256xf32>
    %102 = arith.select %100, %98, %101 : vector<8x256xi1>, vector<8x256xf32>
    %c48_70 = arith.constant 48 : index
    %c256_71 = arith.constant 256 : index
    %103 = vector.load %arg8[%c48_70, %c256_71] : memref<72x512xf32, #tpu.memory_space<vmem>>, vector<8x256xf32>
    tpu.vector_store %arg8[%c48_70, %c256_71], %102 {strides = array<i32>} : memref<72x512xf32, #tpu.memory_space<vmem>>, vector<8x256xf32>,
    %c0_72 = arith.constant 0 : index
    %c33_73 = arith.constant 33 : index
    %104 = vector.load %arg7[%c0_72, %c33_73] : memref<8x290xf32, #tpu.memory_space<vmem>>, vector<8x256xf32>
    %c56_74 = arith.constant 56 : index
    %c256_75 = arith.constant 256 : index
    %105 = vector.load %arg8[%c56_74, %c256_75] : memref<72x512xf32, #tpu.memory_space<vmem>>, vector<8x256xf32>
    tpu.vector_store %arg8[%c56_74, %c256_75], %104 {strides = array<i32>} : memref<72x512xf32, #tpu.memory_space<vmem>>, vector<8x256xf32>,
    %c0_76 = arith.constant 0 : index
    %c34_77 = arith.constant 34 : index
    %106 = vector.load %arg7[%c0_76, %c34_77] : memref<8x290xf32, #tpu.memory_space<vmem>>, vector<8x256xf32>
    %cst_78 = arith.constant 0.000000e+00 : f32
    %107 = vector.shape_cast %20 : vector<1x256xi1> to vector<1x256xi1>
    %108 = vector.broadcast %107 : vector<1x256xi1> to vector<8x256xi1>
    %109 = vector.broadcast %cst_78 : f32 to vector<8x256xf32>
    %110 = arith.select %108, %106, %109 : vector<8x256xi1>, vector<8x256xf32>
    %c64_79 = arith.constant 64 : index
    %c256_80 = arith.constant 256 : index
    %111 = vector.load %arg8[%c64_79, %c256_80] : memref<72x512xf32, #tpu.memory_space<vmem>>, vector<8x256xf32>
    tpu.vector_store %arg8[%c64_79, %c256_80], %110 {strides = array<i32>} : memref<72x512xf32, #tpu.memory_space<vmem>>, vector<8x256xf32>,
    %c0_81 = arith.constant 0 : index
    %c0_82 = arith.constant 0 : index
    %112 = vector.load %arg2[%c0_81, %c0_82] : memref<8x72xf32, #tpu.memory_space<vmem>>, vector<8x72xf32>
    %c0_83 = arith.constant 0 : index
    %c0_84 = arith.constant 0 : index
    %113 = vector.load %arg8[%c0_83, %c0_84] : memref<72x512xf32, #tpu.memory_space<vmem>>, vector<72x512xf32>
    %cst_85 = arith.constant dense<0.000000e+00> : vector<8x512xf32>
    %114 = tpu.matmul %112, %113, %cst_85 {dimension_numbers = #tpu.dot_dimension_numbers<[1], [0], [0], [1], [0, 0, 1, 1], [], []>} : vector<8x72xf32>, vector<72x512xf32>, vector<8x512xf32> -> vector<8x512xf32>
    %c0_86 = arith.constant 0 : index
    %c0_87 = arith.constant 0 : index
    %115 = vector.load %arg3[%c0_86, %c0_87] : memref<8x1xf32, #tpu.memory_space<vmem>>, vector<8x1xf32>
    %116 = vector.broadcast %115 : vector<8x1xf32> to vector<8x512xf32>
    %117 = arith.addf %114, %116 : vector<8x512xf32>
    %cst_88 = arith.constant 0.000000e+00 : f32
    %118 = vector.broadcast %cst_88 : f32 to vector<8x512xf32>
    %119 = arith.maximumf %117, %118 : vector<8x512xf32>
    %120 = vector.extract_strided_slice %119 {offsets = [0, 0], sizes = [8, 256], strides = [1, 1]} : vector<8x512xf32> to vector<8x256xf32>
    %c0_89 = arith.constant 0 : index
    %c17_90 = arith.constant 17 : index
    %121 = vector.load %arg7[%c0_89, %c17_90] : memref<8x290xf32, #tpu.memory_space<vmem>>, vector<8x256xf32>
    tpu.vector_store %arg7[%c0_89, %c17_90], %120 {strides = array<i32>} : memref<8x290xf32, #tpu.memory_space<vmem>>, vector<8x256xf32>,
    %c0_91 = arith.constant 0 : index
    %c0_92 = arith.constant 0 : index
    %122 = vector.load %arg7[%c0_91, %c0_92] : memref<8x290xf32, #tpu.memory_space<vmem>>, vector<8x256xf32>
    %cst_93 = arith.constant 0.000000e+00 : f32
    %123 = vector.shape_cast %18 : vector<1x256xi1> to vector<1x256xi1>
    %124 = vector.broadcast %123 : vector<1x256xi1> to vector<8x256xi1>
    %125 = vector.broadcast %cst_93 : f32 to vector<8x256xf32>
    %126 = arith.select %124, %122, %125 : vector<8x256xi1>, vector<8x256xf32>
    %c0_94 = arith.constant 0 : index
    %c0_95 = arith.constant 0 : index
    %127 = vector.load %arg8[%c0_94, %c0_95] : memref<72x512xf32, #tpu.memory_space<vmem>>, vector<8x256xf32>
    tpu.vector_store %arg8[%c0_94, %c0_95], %126 {strides = array<i32>} : memref<72x512xf32, #tpu.memory_space<vmem>>, vector<8x256xf32>,
    %c0_96 = arith.constant 0 : index
    %c1_97 = arith.constant 1 : index
    %128 = vector.load %arg7[%c0_96, %c1_97] : memref<8x290xf32, #tpu.memory_space<vmem>>, vector<8x256xf32>
    %c8_98 = arith.constant 8 : index
    %c0_99 = arith.constant 0 : index
    %129 = vector.load %arg8[%c8_98, %c0_99] : memref<72x512xf32, #tpu.memory_space<vmem>>, vector<8x256xf32>
    tpu.vector_store %arg8[%c8_98, %c0_99], %128 {strides = array<i32>} : memref<72x512xf32, #tpu.memory_space<vmem>>, vector<8x256xf32>,
    %c0_100 = arith.constant 0 : index
    %c2_101 = arith.constant 2 : index
    %130 = vector.load %arg7[%c0_100, %c2_101] : memref<8x290xf32, #tpu.memory_space<vmem>>, vector<8x256xf32>
    %cst_102 = arith.constant 0.000000e+00 : f32
    %131 = vector.shape_cast %20 : vector<1x256xi1> to vector<1x256xi1>
    %132 = vector.broadcast %131 : vector<1x256xi1> to vector<8x256xi1>
    %133 = vector.broadcast %cst_102 : f32 to vector<8x256xf32>
    %134 = arith.select %132, %130, %133 : vector<8x256xi1>, vector<8x256xf32>
    %c16_103 = arith.constant 16 : index
    %c0_104 = arith.constant 0 : index
    %135 = vector.load %arg8[%c16_103, %c0_104] : memref<72x512xf32, #tpu.memory_space<vmem>>, vector<8x256xf32>
    tpu.vector_store %arg8[%c16_103, %c0_104], %134 {strides = array<i32>} : memref<72x512xf32, #tpu.memory_space<vmem>>, vector<8x256xf32>,
    %c0_105 = arith.constant 0 : index
    %c16_106 = arith.constant 16 : index
    %136 = vector.load %arg7[%c0_105, %c16_106] : memref<8x290xf32, #tpu.memory_space<vmem>>, vector<8x256xf32>
    %cst_107 = arith.constant 0.000000e+00 : f32
    %137 = vector.shape_cast %18 : vector<1x256xi1> to vector<1x256xi1>
    %138 = vector.broadcast %137 : vector<1x256xi1> to vector<8x256xi1>
    %139 = vector.broadcast %cst_107 : f32 to vector<8x256xf32>
    %140 = arith.select %138, %136, %139 : vector<8x256xi1>, vector<8x256xf32>
    %c24_108 = arith.constant 24 : index
    %c0_109 = arith.constant 0 : index
    %141 = vector.load %arg8[%c24_108, %c0_109] : memref<72x512xf32, #tpu.memory_space<vmem>>, vector<8x256xf32>
    tpu.vector_store %arg8[%c24_108, %c0_109], %140 {strides = array<i32>} : memref<72x512xf32, #tpu.memory_space<vmem>>, vector<8x256xf32>,
    %c32_110 = arith.constant 32 : index
    %c0_111 = arith.constant 0 : index
    %142 = vector.load %arg8[%c32_110, %c0_111] : memref<72x512xf32, #tpu.memory_space<vmem>>, vector<8x256xf32>
    tpu.vector_store %arg8[%c32_110, %c0_111], %120 {strides = array<i32>} : memref<72x512xf32, #tpu.memory_space<vmem>>, vector<8x256xf32>,
    %c0_112 = arith.constant 0 : index
    %c18_113 = arith.constant 18 : index
    %143 = vector.load %arg7[%c0_112, %c18_113] : memref<8x290xf32, #tpu.memory_space<vmem>>, vector<8x256xf32>
    %cst_114 = arith.constant 0.000000e+00 : f32
    %144 = vector.shape_cast %20 : vector<1x256xi1> to vector<1x256xi1>
    %145 = vector.broadcast %144 : vector<1x256xi1> to vector<8x256xi1>
    %146 = vector.broadcast %cst_114 : f32 to vector<8x256xf32>
    %147 = arith.select %145, %143, %146 : vector<8x256xi1>, vector<8x256xf32>
    %c40_115 = arith.constant 40 : index
    %c0_116 = arith.constant 0 : index
    %148 = vector.load %arg8[%c40_115, %c0_116] : memref<72x512xf32, #tpu.memory_space<vmem>>, vector<8x256xf32>
    tpu.vector_store %arg8[%c40_115, %c0_116], %147 {strides = array<i32>} : memref<72x512xf32, #tpu.memory_space<vmem>>, vector<8x256xf32>,
    %c0_117 = arith.constant 0 : index
    %c32_118 = arith.constant 32 : index
    %149 = vector.load %arg7[%c0_117, %c32_118] : memref<8x290xf32, #tpu.memory_space<vmem>>, vector<8x256xf32>
    %cst_119 = arith.constant 0.000000e+00 : f32
    %150 = vector.shape_cast %18 : vector<1x256xi1> to vector<1x256xi1>
    %151 = vector.broadcast %150 : vector<1x256xi1> to vector<8x256xi1>
    %152 = vector.broadcast %cst_119 : f32 to vector<8x256xf32>
    %153 = arith.select %151, %149, %152 : vector<8x256xi1>, vector<8x256xf32>
    %c48_120 = arith.constant 48 : index
    %c0_121 = arith.constant 0 : index
    %154 = vector.load %arg8[%c48_120, %c0_121] : memref<72x512xf32, #tpu.memory_space<vmem>>, vector<8x256xf32>
    tpu.vector_store %arg8[%c48_120, %c0_121], %153 {strides = array<i32>} : memref<72x512xf32, #tpu.memory_space<vmem>>, vector<8x256xf32>,
    %c0_122 = arith.constant 0 : index
    %c33_123 = arith.constant 33 : index
    %155 = vector.load %arg7[%c0_122, %c33_123] : memref<8x290xf32, #tpu.memory_space<vmem>>, vector<8x256xf32>
    %c56_124 = arith.constant 56 : index
    %c0_125 = arith.constant 0 : index
    %156 = vector.load %arg8[%c56_124, %c0_125] : memref<72x512xf32, #tpu.memory_space<vmem>>, vector<8x256xf32>
    tpu.vector_store %arg8[%c56_124, %c0_125], %155 {strides = array<i32>} : memref<72x512xf32, #tpu.memory_space<vmem>>, vector<8x256xf32>,
    %c0_126 = arith.constant 0 : index
    %c34_127 = arith.constant 34 : index
    %157 = vector.load %arg7[%c0_126, %c34_127] : memref<8x290xf32, #tpu.memory_space<vmem>>, vector<8x256xf32>
    %cst_128 = arith.constant 0.000000e+00 : f32
    %158 = vector.shape_cast %20 : vector<1x256xi1> to vector<1x256xi1>
    %159 = vector.broadcast %158 : vector<1x256xi1> to vector<8x256xi1>
    %160 = vector.broadcast %cst_128 : f32 to vector<8x256xf32>
    %161 = arith.select %159, %157, %160 : vector<8x256xi1>, vector<8x256xf32>
    %c64_129 = arith.constant 64 : index
    %c0_130 = arith.constant 0 : index
    %162 = vector.load %arg8[%c64_129, %c0_130] : memref<72x512xf32, #tpu.memory_space<vmem>>, vector<8x256xf32>
    tpu.vector_store %arg8[%c64_129, %c0_130], %161 {strides = array<i32>} : memref<72x512xf32, #tpu.memory_space<vmem>>, vector<8x256xf32>,
    %163 = vector.extract_strided_slice %119 {offsets = [0, 256], sizes = [8, 256], strides = [1, 1]} : vector<8x512xf32> to vector<8x256xf32>
    %c0_131 = arith.constant 0 : index
    %c17_132 = arith.constant 17 : index
    %164 = vector.load %arg7[%c0_131, %c17_132] : memref<8x290xf32, #tpu.memory_space<vmem>>, vector<8x256xf32>
    tpu.vector_store %arg7[%c0_131, %c17_132], %163 {strides = array<i32>} : memref<8x290xf32, #tpu.memory_space<vmem>>, vector<8x256xf32>,
    %c0_133 = arith.constant 0 : index
    %c0_134 = arith.constant 0 : index
    %165 = vector.load %arg7[%c0_133, %c0_134] : memref<8x290xf32, #tpu.memory_space<vmem>>, vector<8x256xf32>
    %cst_135 = arith.constant 0.000000e+00 : f32
    %166 = vector.shape_cast %18 : vector<1x256xi1> to vector<1x256xi1>
    %167 = vector.broadcast %166 : vector<1x256xi1> to vector<8x256xi1>
    %168 = vector.broadcast %cst_135 : f32 to vector<8x256xf32>
    %169 = arith.select %167, %165, %168 : vector<8x256xi1>, vector<8x256xf32>
    %c0_136 = arith.constant 0 : index
    %c256_137 = arith.constant 256 : index
    %170 = vector.load %arg8[%c0_136, %c256_137] : memref<72x512xf32, #tpu.memory_space<vmem>>, vector<8x256xf32>
    tpu.vector_store %arg8[%c0_136, %c256_137], %169 {strides = array<i32>} : memref<72x512xf32, #tpu.memory_space<vmem>>, vector<8x256xf32>,
    %c0_138 = arith.constant 0 : index
    %c1_139 = arith.constant 1 : index
    %171 = vector.load %arg7[%c0_138, %c1_139] : memref<8x290xf32, #tpu.memory_space<vmem>>, vector<8x256xf32>
    %c8_140 = arith.constant 8 : index
    %c256_141 = arith.constant 256 : index
    %172 = vector.load %arg8[%c8_140, %c256_141] : memref<72x512xf32, #tpu.memory_space<vmem>>, vector<8x256xf32>
    tpu.vector_store %arg8[%c8_140, %c256_141], %171 {strides = array<i32>} : memref<72x512xf32, #tpu.memory_space<vmem>>, vector<8x256xf32>,
    %c0_142 = arith.constant 0 : index
    %c2_143 = arith.constant 2 : index
    %173 = vector.load %arg7[%c0_142, %c2_143] : memref<8x290xf32, #tpu.memory_space<vmem>>, vector<8x256xf32>
    %cst_144 = arith.constant 0.000000e+00 : f32
    %174 = vector.shape_cast %20 : vector<1x256xi1> to vector<1x256xi1>
    %175 = vector.broadcast %174 : vector<1x256xi1> to vector<8x256xi1>
    %176 = vector.broadcast %cst_144 : f32 to vector<8x256xf32>
    %177 = arith.select %175, %173, %176 : vector<8x256xi1>, vector<8x256xf32>
    %c16_145 = arith.constant 16 : index
    %c256_146 = arith.constant 256 : index
    %178 = vector.load %arg8[%c16_145, %c256_146] : memref<72x512xf32, #tpu.memory_space<vmem>>, vector<8x256xf32>
    tpu.vector_store %arg8[%c16_145, %c256_146], %177 {strides = array<i32>} : memref<72x512xf32, #tpu.memory_space<vmem>>, vector<8x256xf32>,
    %c0_147 = arith.constant 0 : index
    %c16_148 = arith.constant 16 : index
    %179 = vector.load %arg7[%c0_147, %c16_148] : memref<8x290xf32, #tpu.memory_space<vmem>>, vector<8x256xf32>
    %cst_149 = arith.constant 0.000000e+00 : f32
    %180 = vector.shape_cast %18 : vector<1x256xi1> to vector<1x256xi1>
    %181 = vector.broadcast %180 : vector<1x256xi1> to vector<8x256xi1>
    %182 = vector.broadcast %cst_149 : f32 to vector<8x256xf32>
    %183 = arith.select %181, %179, %182 : vector<8x256xi1>, vector<8x256xf32>
    %c24_150 = arith.constant 24 : index
    %c256_151 = arith.constant 256 : index
    %184 = vector.load %arg8[%c24_150, %c256_151] : memref<72x512xf32, #tpu.memory_space<vmem>>, vector<8x256xf32>
    tpu.vector_store %arg8[%c24_150, %c256_151], %183 {strides = array<i32>} : memref<72x512xf32, #tpu.memory_space<vmem>>, vector<8x256xf32>,
    %c32_152 = arith.constant 32 : index
    %c256_153 = arith.constant 256 : index
    %185 = vector.load %arg8[%c32_152, %c256_153] : memref<72x512xf32, #tpu.memory_space<vmem>>, vector<8x256xf32>
    tpu.vector_store %arg8[%c32_152, %c256_153], %163 {strides = array<i32>} : memref<72x512xf32, #tpu.memory_space<vmem>>, vector<8x256xf32>,
    %c0_154 = arith.constant 0 : index
    %c18_155 = arith.constant 18 : index
    %186 = vector.load %arg7[%c0_154, %c18_155] : memref<8x290xf32, #tpu.memory_space<vmem>>, vector<8x256xf32>
    %cst_156 = arith.constant 0.000000e+00 : f32
    %187 = vector.shape_cast %20 : vector<1x256xi1> to vector<1x256xi1>
    %188 = vector.broadcast %187 : vector<1x256xi1> to vector<8x256xi1>
    %189 = vector.broadcast %cst_156 : f32 to vector<8x256xf32>
    %190 = arith.select %188, %186, %189 : vector<8x256xi1>, vector<8x256xf32>
    %c40_157 = arith.constant 40 : index
    %c256_158 = arith.constant 256 : index
    %191 = vector.load %arg8[%c40_157, %c256_158] : memref<72x512xf32, #tpu.memory_space<vmem>>, vector<8x256xf32>
    tpu.vector_store %arg8[%c40_157, %c256_158], %190 {strides = array<i32>} : memref<72x512xf32, #tpu.memory_space<vmem>>, vector<8x256xf32>,
    %c0_159 = arith.constant 0 : index
    %c32_160 = arith.constant 32 : index
    %192 = vector.load %arg7[%c0_159, %c32_160] : memref<8x290xf32, #tpu.memory_space<vmem>>, vector<8x256xf32>
    %cst_161 = arith.constant 0.000000e+00 : f32
    %193 = vector.shape_cast %18 : vector<1x256xi1> to vector<1x256xi1>
    %194 = vector.broadcast %193 : vector<1x256xi1> to vector<8x256xi1>
    %195 = vector.broadcast %cst_161 : f32 to vector<8x256xf32>
    %196 = arith.select %194, %192, %195 : vector<8x256xi1>, vector<8x256xf32>
    %c48_162 = arith.constant 48 : index
    %c256_163 = arith.constant 256 : index
    %197 = vector.load %arg8[%c48_162, %c256_163] : memref<72x512xf32, #tpu.memory_space<vmem>>, vector<8x256xf32>
    tpu.vector_store %arg8[%c48_162, %c256_163], %196 {strides = array<i32>} : memref<72x512xf32, #tpu.memory_space<vmem>>, vector<8x256xf32>,
    %c0_164 = arith.constant 0 : index
    %c33_165 = arith.constant 33 : index
    %198 = vector.load %arg7[%c0_164, %c33_165] : memref<8x290xf32, #tpu.memory_space<vmem>>, vector<8x256xf32>
    %c56_166 = arith.constant 56 : index
    %c256_167 = arith.constant 256 : index
    %199 = vector.load %arg8[%c56_166, %c256_167] : memref<72x512xf32, #tpu.memory_space<vmem>>, vector<8x256xf32>
    tpu.vector_store %arg8[%c56_166, %c256_167], %198 {strides = array<i32>} : memref<72x512xf32, #tpu.memory_space<vmem>>, vector<8x256xf32>,
    %c0_168 = arith.constant 0 : index
    %c34_169 = arith.constant 34 : index
    %200 = vector.load %arg7[%c0_168, %c34_169] : memref<8x290xf32, #tpu.memory_space<vmem>>, vector<8x256xf32>
    %cst_170 = arith.constant 0.000000e+00 : f32
    %201 = vector.shape_cast %20 : vector<1x256xi1> to vector<1x256xi1>
    %202 = vector.broadcast %201 : vector<1x256xi1> to vector<8x256xi1>
    %203 = vector.broadcast %cst_170 : f32 to vector<8x256xf32>
    %204 = arith.select %202, %200, %203 : vector<8x256xi1>, vector<8x256xf32>
    %c64_171 = arith.constant 64 : index
    %c256_172 = arith.constant 256 : index
    %205 = vector.load %arg8[%c64_171, %c256_172] : memref<72x512xf32, #tpu.memory_space<vmem>>, vector<8x256xf32>
    tpu.vector_store %arg8[%c64_171, %c256_172], %204 {strides = array<i32>} : memref<72x512xf32, #tpu.memory_space<vmem>>, vector<8x256xf32>,
    %c0_173 = arith.constant 0 : index
    %c0_174 = arith.constant 0 : index
    %206 = vector.load %arg4[%c0_173, %c0_174] : memref<8x72xf32, #tpu.memory_space<vmem>>, vector<8x72xf32>
    %c0_175 = arith.constant 0 : index
    %c0_176 = arith.constant 0 : index
    %207 = vector.load %arg8[%c0_175, %c0_176] : memref<72x512xf32, #tpu.memory_space<vmem>>, vector<72x512xf32>
    %cst_177 = arith.constant dense<0.000000e+00> : vector<8x512xf32>
    %208 = tpu.matmul %206, %207, %cst_177 {dimension_numbers = #tpu.dot_dimension_numbers<[1], [0], [0], [1], [0, 0, 1, 1], [], []>} : vector<8x72xf32>, vector<72x512xf32>, vector<8x512xf32> -> vector<8x512xf32>
    %c0_178 = arith.constant 0 : index
    %c0_179 = arith.constant 0 : index
    %209 = vector.load %arg5[%c0_178, %c0_179] : memref<8x1xf32, #tpu.memory_space<vmem>>, vector<8x1xf32>
    %210 = vector.broadcast %209 : vector<8x1xf32> to vector<8x512xf32>
    %211 = arith.addf %208, %210 : vector<8x512xf32>
    %c0_180 = arith.constant 0 : index
    %c0_181 = arith.constant 0 : index
    %c0_182 = arith.constant 0 : index
    %212 = vector.load %arg1[%c0_180, %c0_181, %c0_182] : memref<2x8x256xf32, #tpu.memory_space<vmem>>, vector<1x8x256xf32>
    %213 = vector.shape_cast %212 : vector<1x8x256xf32> to vector<8x256xf32>
    %214 = vector.extract_strided_slice %211 {offsets = [0, 0], sizes = [8, 256], strides = [1, 1]} : vector<8x512xf32> to vector<8x256xf32>
    %cst_183 = arith.constant 5.000000e-01 : f32
    %215 = vector.broadcast %cst_183 : f32 to vector<8x256xf32>
    %216 = arith.mulf %215, %214 : vector<8x256xf32>
    %217 = arith.addf %213, %216 : vector<8x256xf32>
    %c0_184 = arith.constant 0 : index
    %c0_185 = arith.constant 0 : index
    %c0_186 = arith.constant 0 : index
    %218 = vector.load %arg6[%c0_184, %c0_185, %c0_186] : memref<2x8x256xf32, #tpu.memory_space<vmem>>, vector<1x8x256xf32>
    %219 = vector.shape_cast %218 : vector<1x8x256xf32> to vector<8x256xf32>
    %220 = vector.shape_cast %217 : vector<8x256xf32> to vector<1x8x256xf32>
    tpu.vector_store %arg6[%c0_184, %c0_185, %c0_186], %220 {strides = array<i32>} : memref<2x8x256xf32, #tpu.memory_space<vmem>>, vector<1x8x256xf32>,
    %c1_187 = arith.constant 1 : index
    %c0_188 = arith.constant 0 : index
    %c0_189 = arith.constant 0 : index
    %221 = vector.load %arg1[%c1_187, %c0_188, %c0_189] : memref<2x8x256xf32, #tpu.memory_space<vmem>>, vector<1x8x256xf32>
    %222 = vector.shape_cast %221 : vector<1x8x256xf32> to vector<8x256xf32>
    %223 = vector.extract_strided_slice %211 {offsets = [0, 256], sizes = [8, 256], strides = [1, 1]} : vector<8x512xf32> to vector<8x256xf32>
    %cst_190 = arith.constant 5.000000e-01 : f32
    %224 = vector.broadcast %cst_190 : f32 to vector<8x256xf32>
    %225 = arith.mulf %224, %223 : vector<8x256xf32>
    %226 = arith.addf %222, %225 : vector<8x256xf32>
    %c1_191 = arith.constant 1 : index
    %c0_192 = arith.constant 0 : index
    %c0_193 = arith.constant 0 : index
    %227 = vector.load %arg6[%c1_191, %c0_192, %c0_193] : memref<2x8x256xf32, #tpu.memory_space<vmem>>, vector<1x8x256xf32>
    %228 = vector.shape_cast %227 : vector<1x8x256xf32> to vector<8x256xf32>
    %229 = vector.shape_cast %226 : vector<8x256xf32> to vector<1x8x256xf32>
    tpu.vector_store %arg6[%c1_191, %c0_192, %c0_193], %229 {strides = array<i32>} : memref<2x8x256xf32, #tpu.memory_space<vmem>>, vector<1x8x256xf32>,
    return
  }
  func.func @transform_0(%arg0: i32) -> (i32, i32, i32) {
    %c0_i32 = arith.constant 0 : i32
    %c0_i32_0 = arith.constant 0 : i32
    %c0_i32_1 = arith.constant 0 : i32
    return %arg0, %c0_i32, %c0_i32_0 : i32, i32, i32
  }
  func.func @transform_1(%arg0: i32) -> (i32, i32) {
    %c0_i32 = arith.constant 0 : i32
    %c0_i32_0 = arith.constant 0 : i32
    %c0_i32_1 = arith.constant 0 : i32
    return %c0_i32, %c0_i32_0 : i32, i32
  }
  func.func @transform_2(%arg0: i32) -> (i32, i32) {
    %c0_i32 = arith.constant 0 : i32
    %c0_i32_0 = arith.constant 0 : i32
    %c0_i32_1 = arith.constant 0 : i32
    return %c0_i32, %c0_i32_0 : i32, i32
  }
  func.func @transform_3(%arg0: i32) -> (i32, i32) {
    %c0_i32 = arith.constant 0 : i32
    %c0_i32_0 = arith.constant 0 : i32
    %c0_i32_1 = arith.constant 0 : i32
    return %c0_i32, %c0_i32_0 : i32, i32
  }
  func.func @transform_4(%arg0: i32) -> (i32, i32) {
    %c0_i32 = arith.constant 0 : i32
    %c0_i32_0 = arith.constant 0 : i32
    %c0_i32_1 = arith.constant 0 : i32
    return %c0_i32, %c0_i32_0 : i32, i32
  }
  func.func @transform_5(%arg0: i32) -> (i32, i32, i32) {
    %c0_i32 = arith.constant 0 : i32
    %c0_i32_0 = arith.constant 0 : i32
    %c0_i32_1 = arith.constant 0 : i32
    return %arg0, %c0_i32, %c0_i32_0 : i32, i32, i32
  }
}

</mosaic_0001>

<llo_original>
// kernel: tpu_custom_call.1
$region0: #{tpu_custom_call.1}
  #allocation0 [shape = 'u32[]', space=smem, size = 0x4, offset = 0x4, fixed_abs, tag = 'smem constant byte address 0x4 - core index']
  #allocation1 [shape = 'u32[144,128]{1,0:T(1,128)}', space=vmem, size = 0x12000, scoped, tag = 'internal scratch']
  #allocation2 [shape = 'f32[8,290]{1,0:T(8,128)}', space=vmem, size = 0x3000, scoped, tag = 'scratch operand']
  #allocation3 [shape = 'f32[72,512]{1,0:T(8,128)}', space=vmem, size = 0x24000, scoped, tag = 'scratch operand']
  %s0 = inlined_call_operand.hbm [shape: f32[2,8,256], index: 0, kind: input, shape index: {}]
  %s1 = inlined_call_operand.vmem [shape: f32[8,72], index: 1, kind: input, shape index: {}]
  %s2 = inlined_call_operand.vmem [shape: f32[8,1], index: 2, kind: input, shape index: {}]
  %s3 = inlined_call_operand.vmem [shape: f32[8,72], index: 3, kind: input, shape index: {}]
  %s4 = inlined_call_operand.vmem [shape: f32[8,1], index: 4, kind: input, shape index: {}]
  %s5 = inlined_call_operand.hbm [shape: f32[2,8,256], index: 5, kind: output, shape index: {}]
  %s6 = sld [smem:[#allocation0]]
  $region34: #{tpu_custom_call.1} parent=0
    _
  %s8 = ssub.s32 1, %s6
  %s9 = scalar_select 0, %s8, %s6
  $region1: #{tpu_custom_call.1} parent=0
    #allocation4 [shape = 'u8[16384]{0}', space=vmem, size = 0x4000, scoped, tag = 'input window, operand 0, single buffered']
    #allocation5 [shape = 's32[1]{0}', space=sflag, size = 0x4, scoped, tag = 'scoped memory for tpu_custom_call.1']
    #allocation6 [shape = 's32[1]{0}', space=sflag, size = 0x4, scoped, tag = 'scoped memory for tpu_custom_call.1']
    #allocation7 [shape = 'u8[16384]{0}', space=vmem, size = 0x4000, scoped, tag = 'output window, operand 0, single buffered']
    %10 = vsyncpa [#allocation5], 0
    %11 = vsyncpa [#allocation6], 0
    // Predicated region
    $region2: #{tpu_custom_call.1} parent=1 // pred_check
      _
    $region3: #{tpu_custom_call.1} parent=1 // pred_check_branch
      %13 = sbr.rel (0) target = $region5
    $region4: #{tpu_custom_call.1} parent=1 // pred_region
      %s15 = ssub.s32 512, 512
      %16 = vsyncadd [#allocation5], %s15
      %s17 = sshll.u32 [#allocation4], 4
      %s18 = int_to_ptr.vmem [resolvable:$true] %s17
      %23 = dma.hbm_to_vmem [thread:$0]  %s0, 512, %s18, [#allocation5], 256, 256, 16
    $region5: #{tpu_custom_call.1} parent=1 // pred_fallthru
      _
    // Predicated region
    $region6: #{tpu_custom_call.1} parent=1 // pred_check
      _
    $region7: #{tpu_custom_call.1} parent=1 // pred_check_branch
      %25 = sbr.rel (0) target = $region9
    $region8: #{tpu_custom_call.1} parent=1 // pred_region
      _
    $region9: #{tpu_custom_call.1} parent=1 // pred_fallthru
      _
    // Predicated region
    $region10: #{tpu_custom_call.1} parent=1 // pred_check
      _
    $region11: #{tpu_custom_call.1} parent=1 // pred_check_branch
      %27 = sbr.rel (0) target = $region13
    $region12: #{tpu_custom_call.1} parent=1 // pred_region
      _
    $region13: #{tpu_custom_call.1} parent=1 // pred_fallthru
      _
    // Predicated region
    $region14: #{tpu_custom_call.1} parent=1 // pred_check
      _
    $region15: #{tpu_custom_call.1} parent=1 // pred_check_branch
      %29 = sbr.rel (0) target = $region17
    $region16: #{tpu_custom_call.1} parent=1 // pred_region
      _
    $region17: #{tpu_custom_call.1} parent=1 // pred_fallthru
      _
    // Predicated region
    $region18: #{tpu_custom_call.1} parent=1 // pred_check
      _
    $region19: #{tpu_custom_call.1} parent=1 // pred_check_branch
      %31 = sbr.rel (0) target = $region21
    $region20: #{tpu_custom_call.1} parent=1 // pred_region
      _
    $region21: #{tpu_custom_call.1} parent=1 // pred_fallthru
      _
    // Predicated region
    $region22: #{tpu_custom_call.1} parent=1 // pred_check
      _
    $region23: #{tpu_custom_call.1} parent=1 // pred_check_branch
      %33 = sbr.rel (0) target = $region25
    $region24: #{tpu_custom_call.1} parent=1 // pred_region
      %34 = dma.done [#allocation5], 512
    $region25: #{tpu_custom_call.1} parent=1 // pred_fallthru
      _
    %v35 = vlaneseq
    %v36 = vand.u32 %v35, 127
    %v37 = vadd.s32 %v36, 128
    %vm38 = vcmp.lt.s32.totalorder %v36, 0
    %v39 = vsub.s32 0, %v36
    %v40 = vsel %vm38, %v39, %v36
    %v41 = vshrl.u32 %v40, 4
    %v42 = vand.u32 %v40, 15
    %v43 = vsub.s32 0, %v42
    %v44 = vsel %vm38, %v43, %v42
    %vm45 = vcmp.lt.s32.totalorder %v37, 0
    %v46 = vsub.s32 0, %v37
    %v47 = vsel %vm45, %v46, %v37
    %v48 = vshrl.u32 %v47, 4
    %v49 = vand.u32 %v47, 15
    %v50 = vsub.s32 0, %v49
    %v51 = vsel %vm45, %v50, %v49
    %vm52 = vcmp.ne.s32.totalorder %v44, 0
    %vm53 = vcmp.ne.s32.totalorder %v51, 0
    %vm54 = vcmp.lt.s32.totalorder %v44, 0
    %vm55 = vcmp.lt.s32.totalorder %v51, 0
    %vm56 = vmand %vm54, %vm52
    %vm57 = vmand %vm55, %vm53
    %v58 = vadd.s32 %v44, 16
    %v59 = vadd.s32 %v51, 16
    %v60 = vsel %vm56, %v58, %v44
    %v61 = vsel %vm57, %v59, %v51
    %vm62 = vcmp.ge.s32.totalorder %v60, 1
    %vm63 = vcmp.ge.s32.totalorder %v61, 1
    %vm64 = vcmp.lt.s32.totalorder %v60, 15
    %vm65 = vcmp.lt.s32.totalorder %v61, 15
    %vm66 = vcmask 138240
    %67 = vst.msk [vmem:[#allocation2] sm:$0xff] %vm66, 0.0
    %vm68 = vcmask 277640
    %69 = vst.msk [vmem:[#allocation2 + $0x10] sm:$0xff] %vm68, 0.0
    %v70 = vld [vmem:[#allocation4] sm:$0xff]
    %v71 = vld [vmem:[#allocation4 + $0x8] sm:$0xff]
    %74 = vrot.lane.b32.xlu0 %v70, 17
    %v75 = vpop.permute.xlu0 %74
    %76 = vrot.lane.b32.xlu0 %v71, 17
    %v77 = vpop.permute.xlu0 %76
    %v78 = vsel %vm66, %v75, %v77
    %vm82 = vcmask 1047688
    %83 = vst.msk [vmem:[#allocation2] sm:$0xff] %vm82, %v75
    %84 = vst [vmem:[#allocation2 + $0x8] sm:$0xff] %v78
    %85 = vst.msk [vmem:[#allocation2 + $0x10] sm:$0xff] %vm66, %v77
    %v86 = vld [vmem:[#allocation2] sm:$0xff]
    %v87 = vld [vmem:[#allocation2 + $0x8] sm:$0xff]
    %v88 = vsel %vm62, 1, 0
    %v89 = vsel %vm63, 1, 0
    %vm90 = vcmp.eq.s32.totalorder %v88, 1
    %vm91 = vcmp.eq.s32.totalorder %v89, 1
    %v92 = vsel %vm90, %v86, 0.0
    %v93 = vsel %vm91, %v87, 0.0
    %94 = vst [vmem:[#allocation3] sm:$0xff] %v92
    %95 = vst [vmem:[#allocation3 + $0x8] sm:$0xff] %v93
    %v96 = vld [vmem:[#allocation2] sm:$0xff]
    %v97 = vld [vmem:[#allocation2 + $0x8] sm:$0xff]
    %v98 = vld [vmem:[#allocation2 + $0x10] sm:$0xff]
    %102 = vrot.lane.b32.xlu0 %v96, 127
    %v103 = vpop.permute.xlu0 %102
    %104 = vrot.lane.b32.xlu0 %v97, 127
    %v105 = vpop.permute.xlu0 %104
    %106 = vrot.lane.b32.xlu0 %v98, 127
    %v107 = vpop.permute.xlu0 %106
    %vm108 = vcmask 1039360
    %v109 = vsel %vm108, %v103, %v105
    %v110 = vsel %vm108, %v105, %v107
    %113 = vst [vmem:[#allocation3 + $0x20] sm:$0xff] %v109
    %114 = vst [vmem:[#allocation3 + $0x28] sm:$0xff] %v110
    %v115 = vld [vmem:[#allocation2] sm:$0xff]
    %v116 = vld [vmem:[#allocation2 + $0x8] sm:$0xff]
    %v117 = vld [vmem:[#allocation2 + $0x10] sm:$0xff]
    %v118 = vsel %vm64, 1, 0
    %v119 = vsel %vm65, 1, 0
    %vm120 = vcmp.eq.s32.totalorder %v118, 1
    %vm121 = vcmp.eq.s32.totalorder %v119, 1
    %125 = vrot.lane.b32.xlu0 %v115, 126
    %v126 = vpop.permute.xlu0 %125
    %127 = vrot.lane.b32.xlu0 %v116, 126
    %v128 = vpop.permute.xlu0 %127
    %129 = vrot.lane.b32.xlu0 %v117, 126
    %v130 = vpop.permute.xlu0 %129
    %vm131 = vcmask 1031168
    %v132 = vsel %vm131, %v126, %v128
    %v133 = vsel %vm131, %v128, %v130
    %v136 = vsel %vm120, %v132, 0.0
    %v137 = vsel %vm121, %v133, 0.0
    %138 = vst [vmem:[#allocation3 + $0x40] sm:$0xff] %v136
    %139 = vst [vmem:[#allocation3 + $0x48] sm:$0xff] %v137
    %v140 = vld [vmem:[#allocation2] sm:$0xff]
    %v141 = vld [vmem:[#allocation2 + $0x8] sm:$0xff]
    %v142 = vld [vmem:[#allocation2 + $0x10] sm:$0xff]
    %146 = vrot.lane.b32.xlu0 %v140, 112
    %v147 = vpop.permute.xlu0 %146
    %148 = vrot.lane.b32.xlu0 %v141, 112
    %v149 = vpop.permute.xlu0 %148
    %150 = vrot.lane.b32.xlu0 %v142, 112
    %v151 = vpop.permute.xlu0 %150
    %vm152 = vcmask 916480
    %v153 = vsel %vm152, %v147, %v149
    %v154 = vsel %vm152, %v149, %v151
    %v157 = vsel %vm90, %v153, 0.0
    %v158 = vsel %vm91, %v154, 0.0
    %159 = vst [vmem:[#allocation3 + $0x60] sm:$0xff] %v157
    %160 = vst [vmem:[#allocation3 + $0x68] sm:$0xff] %v158
    %161 = vst [vmem:[#allocation3 + $0x80] sm:$0xff] %v70
    %162 = vst [vmem:[#allocation3 + $0x88] sm:$0xff] %v71
    %v163 = vld [vmem:[#allocation2] sm:$0xff]
    %v164 = vld [vmem:[#allocation2 + $0x8] sm:$0xff]
    %v165 = vld [vmem:[#allocation2 + $0x10] sm:$0xff]
    %169 = vrot.lane.b32.xlu0 %v163, 110
    %v170 = vpop.permute.xlu0 %169
    %171 = vrot.lane.b32.xlu0 %v164, 110
    %v172 = vpop.permute.xlu0 %171
    %173 = vrot.lane.b32.xlu0 %v165, 110
    %v174 = vpop.permute.xlu0 %173
    %vm175 = vcmask 900096
    %v176 = vsel %vm175, %v170, %v172
    %v177 = vsel %vm175, %v172, %v174
    %v180 = vsel %vm120, %v176, 0.0
    %v181 = vsel %vm121, %v177, 0.0
    %182 = vst [vmem:[#allocation3 + $0xa0] sm:$0xff] %v180
    %183 = vst [vmem:[#allocation3 + $0xa8] sm:$0xff] %v181
    %v184 = vld [vmem:[#allocation2] sm:$0xff]
    %v185 = vld [vmem:[#allocation2 + $0x8] sm:$0xff]
    %v186 = vld [vmem:[#allocation2 + $0x10] sm:$0xff]
    %190 = vrot.lane.b32.xlu0 %v184, 96
    %v191 = vpop.permute.xlu0 %190
    %192 = vrot.lane.b32.xlu0 %v185, 96
    %v193 = vpop.permute.xlu0 %192
    %194 = vrot.lane.b32.xlu0 %v186, 96
    %v195 = vpop.permute.xlu0 %194
    %vm196 = vcmask 785408
    %v197 = vsel %vm196, %v191, %v193
    %v198 = vsel %vm196, %v193, %v195
    %v201 = vsel %vm90, %v197, 0.0
    %v202 = vsel %vm91, %v198, 0.0
    %203 = vst [vmem:[#allocation3 + $0xc0] sm:$0xff] %v201
    %204 = vst [vmem:[#allocation3 + $0xc8] sm:$0xff] %v202
    %v205 = vld [vmem:[#allocation2] sm:$0xff]
    %v206 = vld [vmem:[#allocation2 + $0x8] sm:$0xff]
    %v207 = vld [vmem:[#allocation2 + $0x10] sm:$0xff]
    %211 = vrot.lane.b32.xlu0 %v205, 95
    %v212 = vpop.permute.xlu0 %211
    %213 = vrot.lane.b32.xlu0 %v206, 95
    %v214 = vpop.permute.xlu0 %213
    %215 = vrot.lane.b32.xlu0 %v207, 95
    %v216 = vpop.permute.xlu0 %215
    %vm217 = vcmask 777216
    %v218 = vsel %vm217, %v212, %v214
    %v219 = vsel %vm217, %v214, %v216
    %222 = vst [vmem:[#allocation3 + $0xe0] sm:$0xff] %v218
    %223 = vst [vmem:[#allocation3 + $0xe8] sm:$0xff] %v219
    %v224 = vld [vmem:[#allocation2] sm:$0xff]
    %v225 = vld [vmem:[#allocation2 + $0x8] sm:$0xff]
    %v226 = vld [vmem:[#allocation2 + $0x10] sm:$0xff]
    %230 = vrot.lane.b32.xlu0 %v224, 94
    %v231 = vpop.permute.xlu0 %230
    %232 = vrot.lane.b32.xlu0 %v225, 94
    %v233 = vpop.permute.xlu0 %232
    %234 = vrot.lane.b32.xlu0 %v226, 94
    %v235 = vpop.permute.xlu0 %234
    %vm236 = vcmask 769024
    %v237 = vsel %vm236, %v231, %v233
    %v238 = vsel %vm236, %v233, %v235
    %v241 = vsel %vm120, %v237, 0.0
    %v242 = vsel %vm121, %v238, 0.0
    %243 = vst [vmem:[#allocation3 + $0x100] sm:$0xff] %v241
    %244 = vst [vmem:[#allocation3 + $0x108] sm:$0xff] %v242
    %s245 = scalar_lea.vmem [#allocation4], 16
    %v246 = vld [vmem:[%s245] sm:$0xff]
    %v247 = vld [vmem:[%s245 + $0x8] sm:$0xff]
    %250 = vrot.lane.b32.xlu0 %v246, 17
    %v251 = vpop.permute.xlu0 %250
    %252 = vrot.lane.b32.xlu0 %v247, 17
    %v253 = vpop.permute.xlu0 %252
    %v254 = vsel %vm66, %v251, %v253
    %258 = vst.msk [vmem:[#allocation2] sm:$0xff] %vm82, %v251
    %259 = vst [vmem:[#allocation2 + $0x8] sm:$0xff] %v254
    %260 = vst.msk [vmem:[#allocation2 + $0x10] sm:$0xff] %vm66, %v253
    %v261 = vld [vmem:[#allocation2] sm:$0xff]
    %v262 = vld [vmem:[#allocation2 + $0x8] sm:$0xff]
    %v263 = vsel %vm90, %v261, 0.0
    %v264 = vsel %vm91, %v262, 0.0
    %265 = vst [vmem:[#allocation3 + $0x10] sm:$0xff] %v263
    %266 = vst [vmem:[#allocation3 + $0x18] sm:$0xff] %v264
    %v267 = vld [vmem:[#allocation2] sm:$0xff]
    %v268 = vld [vmem:[#allocation2 + $0x8] sm:$0xff]
    %v269 = vld [vmem:[#allocation2 + $0x10] sm:$0xff]
    %273 = vrot.lane.b32.xlu0 %v267, 127
    %v274 = vpop.permute.xlu0 %273
    %275 = vrot.lane.b32.xlu0 %v268, 127
    %v276 = vpop.permute.xlu0 %275
    %277 = vrot.lane.b32.xlu0 %v269, 127
    %v278 = vpop.permute.xlu0 %277
    %v279 = vsel %vm108, %v274, %v276
    %v280 = vsel %vm108, %v276, %v278
    %283 = vst [vmem:[#allocation3 + $0x30] sm:$0xff] %v279
    %284 = vst [vmem:[#allocation3 + $0x38] sm:$0xff] %v280
    %v285 = vld [vmem:[#allocation2] sm:$0xff]
    %v286 = vld [vmem:[#allocation2 + $0x8] sm:$0xff]
    %v287 = vld [vmem:[#allocation2 + $0x10] sm:$0xff]
    %291 = vrot.lane.b32.xlu0 %v285, 126
    %v292 = vpop.permute.xlu0 %291
    %293 = vrot.lane.b32.xlu0 %v286, 126
    %v294 = vpop.permute.xlu0 %293
    %295 = vrot.lane.b32.xlu0 %v287, 126
    %v296 = vpop.permute.xlu0 %295
    %v297 = vsel %vm131, %v292, %v294
    %v298 = vsel %vm131, %v294, %v296
    %v301 = vsel %vm120, %v297, 0.0
    %v302 = vsel %vm121, %v298, 0.0
    %303 = vst [vmem:[#allocation3 + $0x50] sm:$0xff] %v301
    %304 = vst [vmem:[#allocation3 + $0x58] sm:$0xff] %v302
    %v305 = vld [vmem:[#allocation2] sm:$0xff]
    %v306 = vld [vmem:[#allocation2 + $0x8] sm:$0xff]
    %v307 = vld [vmem:[#allocation2 + $0x10] sm:$0xff]
    %311 = vrot.lane.b32.xlu0 %v305, 112
    %v312 = vpop.permute.xlu0 %311
    %313 = vrot.lane.b32.xlu0 %v306, 112
    %v314 = vpop.permute.xlu0 %313
    %315 = vrot.lane.b32.xlu0 %v307, 112
    %v316 = vpop.permute.xlu0 %315
    %v317 = vsel %vm152, %v312, %v314
    %v318 = vsel %vm152, %v314, %v316
    %v321 = vsel %vm90, %v317, 0.0
    %v322 = vsel %vm91, %v318, 0.0
    %323 = vst [vmem:[#allocation3 + $0x70] sm:$0xff] %v321
    %324 = vst [vmem:[#allocation3 + $0x78] sm:$0xff] %v322
    %325 = vst [vmem:[#allocation3 + $0x90] sm:$0xff] %v246
    %326 = vst [vmem:[#allocation3 + $0x98] sm:$0xff] %v247
    %v327 = vld [vmem:[#allocation2] sm:$0xff]
    %v328 = vld [vmem:[#allocation2 + $0x8] sm:$0xff]
    %v329 = vld [vmem:[#allocation2 + $0x10] sm:$0xff]
    %333 = vrot.lane.b32.xlu0 %v327, 110
    %v334 = vpop.permute.xlu0 %333
    %335 = vrot.lane.b32.xlu0 %v328, 110
    %v336 = vpop.permute.xlu0 %335
    %337 = vrot.lane.b32.xlu0 %v329, 110
    %v338 = vpop.permute.xlu0 %337
    %v339 = vsel %vm175, %v334, %v336
    %v340 = vsel %vm175, %v336, %v338
    %v343 = vsel %vm120, %v339, 0.0
    %v344 = vsel %vm121, %v340, 0.0
    %345 = vst [vmem:[#allocation3 + $0xb0] sm:$0xff] %v343
    %346 = vst [vmem:[#allocation3 + $0xb8] sm:$0xff] %v344
    %v347 = vld [vmem:[#allocation2] sm:$0xff]
    %v348 = vld [vmem:[#allocation2 + $0x8] sm:$0xff]
    %v349 = vld [vmem:[#allocation2 + $0x10] sm:$0xff]
    %353 = vrot.lane.b32.xlu0 %v347, 96
    %v354 = vpop.permute.xlu0 %353
    %355 = vrot.lane.b32.xlu0 %v348, 96
    %v356 = vpop.permute.xlu0 %355
    %357 = vrot.lane.b32.xlu0 %v349, 96
    %v358 = vpop.permute.xlu0 %357
    %v359 = vsel %vm196, %v354, %v356
    %v360 = vsel %vm196, %v356, %v358
    %v363 = vsel %vm90, %v359, 0.0
    %v364 = vsel %vm91, %v360, 0.0
    %365 = vst [vmem:[#allocation3 + $0xd0] sm:$0xff] %v363
    %366 = vst [vmem:[#allocation3 + $0xd8] sm:$0xff] %v364
    %v367 = vld [vmem:[#allocation2] sm:$0xff]
    %v368 = vld [vmem:[#allocation2 + $0x8] sm:$0xff]
    %v369 = vld [vmem:[#allocation2 + $0x10] sm:$0xff]
    %373 = vrot.lane.b32.xlu0 %v367, 95
    %v374 = vpop.permute.xlu0 %373
    %375 = vrot.lane.b32.xlu0 %v368, 95
    %v376 = vpop.permute.xlu0 %375
    %377 = vrot.lane.b32.xlu0 %v369, 95
    %v378 = vpop.permute.xlu0 %377
    %v379 = vsel %vm217, %v374, %v376
    %v380 = vsel %vm217, %v376, %v378
    %383 = vst [vmem:[#allocation3 + $0xf0] sm:$0xff] %v379
    %384 = vst [vmem:[#allocation3 + $0xf8] sm:$0xff] %v380
    %v385 = vld [vmem:[#allocation2] sm:$0xff]
    %v386 = vld [vmem:[#allocation2 + $0x8] sm:$0xff]
    %v387 = vld [vmem:[#allocation2 + $0x10] sm:$0xff]
    %391 = vrot.lane.b32.xlu0 %v385, 94
    %v392 = vpop.permute.xlu0 %391
    %393 = vrot.lane.b32.xlu0 %v386, 94
    %v394 = vpop.permute.xlu0 %393
    %395 = vrot.lane.b32.xlu0 %v387, 94
    %v396 = vpop.permute.xlu0 %395
    %v397 = vsel %vm236, %v392, %v394
    %v398 = vsel %vm236, %v394, %v396
    %v401 = vsel %vm120, %v397, 0.0
    %v402 = vsel %vm121, %v398, 0.0
    %403 = vst [vmem:[#allocation3 + $0x110] sm:$0xff] %v401
    %404 = vst [vmem:[#allocation3 + $0x118] sm:$0xff] %v402
    %v405 = vld [vmem:[%s1] sm:$0xff]
    %v406 = vld [vmem:[#allocation3] sm:$0xff]
    %v407 = vld [vmem:[#allocation3 + $0x8] sm:$0xff]
    %v408 = vld [vmem:[#allocation3 + $0x10] sm:$0xff]
    %v409 = vld [vmem:[#allocation3 + $0x18] sm:$0xff]
    %v410 = vld [vmem:[#allocation3 + $0x20] sm:$0xff]
    %v411 = vld [vmem:[#allocation3 + $0x28] sm:$0xff]
    %v412 = vld [vmem:[#allocation3 + $0x30] sm:$0xff]
    %v413 = vld [vmem:[#allocation3 + $0x38] sm:$0xff]
    %v414 = vld [vmem:[#allocation3 + $0x40] sm:$0xff]
    %v415 = vld [vmem:[#allocation3 + $0x48] sm:$0xff]
    %v416 = vld [vmem:[#allocation3 + $0x50] sm:$0xff]
    %v417 = vld [vmem:[#allocation3 + $0x58] sm:$0xff]
    %v418 = vld [vmem:[#allocation3 + $0x60] sm:$0xff]
    %v419 = vld [vmem:[#allocation3 + $0x68] sm:$0xff]
    %v420 = vld [vmem:[#allocation3 + $0x70] sm:$0xff]
    %v421 = vld [vmem:[#allocation3 + $0x78] sm:$0xff]
    %v422 = vld [vmem:[#allocation3 + $0x80] sm:$0xff]
    %v423 = vld [vmem:[#allocation3 + $0x88] sm:$0xff]
    %v424 = vld [vmem:[#allocation3 + $0x90] sm:$0xff]
    %v425 = vld [vmem:[#allocation3 + $0x98] sm:$0xff]
    %v426 = vld [vmem:[#allocation3 + $0xa0] sm:$0xff]
    %v427 = vld [vmem:[#allocation3 + $0xa8] sm:$0xff]
    %v428 = vld [vmem:[#allocation3 + $0xb0] sm:$0xff]
    %v429 = vld [vmem:[#allocation3 + $0xb8] sm:$0xff]
    %v430 = vld [vmem:[#allocation3 + $0xc0] sm:$0xff]
    %v431 = vld [vmem:[#allocation3 + $0xc8] sm:$0xff]
    %v432 = vld [vmem:[#allocation3 + $0xd0] sm:$0xff]
    %v433 = vld [vmem:[#allocation3 + $0xd8] sm:$0xff]
    %v434 = vld [vmem:[#allocation3 + $0xe0] sm:$0xff]
    %v435 = vld [vmem:[#allocation3 + $0xe8] sm:$0xff]
    %v436 = vld [vmem:[#allocation3 + $0xf0] sm:$0xff]
    %v437 = vld [vmem:[#allocation3 + $0xf8] sm:$0xff]
    %v438 = vld [vmem:[#allocation3 + $0x100] sm:$0xff]
    %v439 = vld [vmem:[#allocation3 + $0x108] sm:$0xff]
    %v440 = vld [vmem:[#allocation3 + $0x110] sm:$0xff]
    %v441 = vld [vmem:[#allocation3 + $0x118] sm:$0xff]
    %v442 = vld [vmem:[%s2] sm:$0xff]
    %444 = vset.pattern.permute.xlu0 0
    %445 = vperm.xlu0 %444, %v442
    %v446 = vpop.permute.xlu0 %445
    %vm448 = vcmask 588800
    %v450 = vsel %vm448, %v405, 0
    %452 = vmatprep.subr.mxu0 0.0
    %453 = vmatpush1.msra.mxu0 0.0
    %454 = vmatprep.subr.mxu0 0.0
    %455 = vmatpush1.msra.mxu0 0.0
    %456 = vmatprep.subr.mxu0 0.0
    %457 = vmatpush1.msra.mxu0 0.0
    %458 = vmatprep.subr.mxu0 0.0
    %459 = vmatpush1.msra.mxu0 0.0
    %460 = vmatprep.subr.mxu0 0.0
    %461 = vmatpush1.msra.mxu0 0.0
    %462 = vmatprep.subr.mxu0 0.0
    %463 = vmatpush1.msra.mxu0 0.0
    %464 = vmatprep.subr.mxu0 0.0
    %465 = vmatpush1.msra.mxu0 0.0
    %466 = vmatprep.subr.mxu0 %v439
    %467 = vmatpush1.msra.mxu0 %v438
    %468 = vmatprep.subr.mxu0 %v435
    %469 = vmatpush1.msra.mxu0 %v434
    %470 = vmatprep.subr.mxu0 %v431
    %471 = vmatpush1.msra.mxu0 %v430
    %472 = vmatprep.subr.mxu0 %v427
    %473 = vmatpush1.msra.mxu0 %v426
    %474 = vmatprep.subr.mxu0 %v423
    %475 = vmatpush1.msra.mxu0 %v422
    %476 = vmatprep.subr.mxu0 %v419
    %477 = vmatpush1.msra.mxu0 %v418
    %478 = vmatprep.subr.mxu0 %v415
    %479 = vmatpush1.msra.mxu0 %v414
    %480 = vmatprep.subr.mxu0 %v411
    %481 = vmatpush1.msra.mxu0 %v410
    %482 = vmatprep.subr.mxu0 %v407
    %483 = vmatpush1.msra.mxu0 %v406
    %484 = vmatprep.subr.mxu0 0.0
    %485 = vmatpush2.msra.mxu0 0.0
    %486 = vmatprep.subr.mxu0 0.0
    %487 = vmatpush2.msra.mxu0 0.0
    %488 = vmatprep.subr.mxu0 0.0
    %489 = vmatpush2.msra.mxu0 0.0
    %490 = vmatprep.subr.mxu0 0.0
    %491 = vmatpush2.msra.mxu0 0.0
    %492 = vmatprep.subr.mxu0 0.0
    %493 = vmatpush2.msra.mxu0 0.0
    %494 = vmatprep.subr.mxu0 0.0
    %495 = vmatpush2.msra.mxu0 0.0
    %496 = vmatprep.subr.mxu0 0.0
    %497 = vmatpush2.msra.mxu0 0.0
    %498 = vmatprep.subr.mxu0 0.0
    %499 = vmatpush2.msra.mxu0 0.0
    %500 = vmatprep.subr.mxu0 0.0
    %501 = vmatpush2.msra.mxu0 0.0
    %502 = vmatprep.subr.mxu0 0.0
    %503 = vmatpush2.msra.mxu0 0.0
    %504 = vmatprep.subr.mxu0 0.0
    %505 = vmatpush2.msra.mxu0 0.0
    %506 = vmatprep.subr.mxu0 0.0
    %507 = vmatpush2.msra.mxu0 0.0
    %508 = vmatprep.subr.mxu0 0.0
    %509 = vmatpush2.msra.mxu0 0.0
    %510 = vmatprep.subr.mxu0 0.0
    %511 = vmatpush2.msra.mxu0 0.0
    %512 = vmatprep.subr.mxu0 0.0
    %513 = vmatpush2.msra.mxu0 0.0
    %514 = vmatprep.subr.mxu0 0.0
    %515 = vmatpush2.msra.mxu0 0.0
    %516 = vmatprep.mubr.f32.mxu0 0.0
    %517 = vmatmul.mubr.f32.gmra.mxu0 %v450
    %v518 = vpop.f32.mrf.mxu0
    %v519 = vadd.f32 %v446, %v518
    %v520 = vpop.f32.mrf.mxu0
    %v521 = vadd.f32 %v446, %v520
    %522 = vdwg.mxu0
    %523 = vmatprep.subr.mxu0 0.0
    %524 = vmatpush1.msra.mxu0 0.0
    %525 = vmatprep.subr.mxu0 0.0
    %526 = vmatpush1.msra.mxu0 0.0
    %527 = vmatprep.subr.mxu0 0.0
    %528 = vmatpush1.msra.mxu0 0.0
    %529 = vmatprep.subr.mxu0 0.0
    %530 = vmatpush1.msra.mxu0 0.0
    %531 = vmatprep.subr.mxu0 0.0
    %532 = vmatpush1.msra.mxu0 0.0
    %533 = vmatprep.subr.mxu0 0.0
    %534 = vmatpush1.msra.mxu0 0.0
    %535 = vmatprep.subr.mxu0 0.0
    %536 = vmatpush1.msra.mxu0 0.0
    %537 = vmatprep.subr.mxu0 %v441
    %538 = vmatpush1.msra.mxu0 %v440
    %539 = vmatprep.subr.mxu0 %v437
    %540 = vmatpush1.msra.mxu0 %v436
    %541 = vmatprep.subr.mxu0 %v433
    %542 = vmatpush1.msra.mxu0 %v432
    %543 = vmatprep.subr.mxu0 %v429
    %544 = vmatpush1.msra.mxu0 %v428
    %545 = vmatprep.subr.mxu0 %v425
    %546 = vmatpush1.msra.mxu0 %v424
    %547 = vmatprep.subr.mxu0 %v421
    %548 = vmatpush1.msra.mxu0 %v420
    %549 = vmatprep.subr.mxu0 %v417
    %550 = vmatpush1.msra.mxu0 %v416
    %551 = vmatprep.subr.mxu0 %v413
    %552 = vmatpush1.msra.mxu0 %v412
    %553 = vmatprep.subr.mxu0 %v409
    %554 = vmatpush1.msra.mxu0 %v408
    %555 = vmatprep.subr.mxu0 0.0
    %556 = vmatpush2.msra.mxu0 0.0
    %557 = vmatprep.subr.mxu0 0.0
    %558 = vmatpush2.msra.mxu0 0.0
    %559 = vmatprep.subr.mxu0 0.0
    %560 = vmatpush2.msra.mxu0 0.0
    %561 = vmatprep.subr.mxu0 0.0
    %562 = vmatpush2.msra.mxu0 0.0
    %563 = vmatprep.subr.mxu0 0.0
    %564 = vmatpush2.msra.mxu0 0.0
    %565 = vmatprep.subr.mxu0 0.0
    %566 = vmatpush2.msra.mxu0 0.0
    %567 = vmatprep.subr.mxu0 0.0
    %568 = vmatpush2.msra.mxu0 0.0
    %569 = vmatprep.subr.mxu0 0.0
    %570 = vmatpush2.msra.mxu0 0.0
    %571 = vmatprep.subr.mxu0 0.0
    %572 = vmatpush2.msra.mxu0 0.0
    %573 = vmatprep.subr.mxu0 0.0
    %574 = vmatpush2.msra.mxu0 0.0
    %575 = vmatprep.subr.mxu0 0.0
    %576 = vmatpush2.msra.mxu0 0.0
    %577 = vmatprep.subr.mxu0 0.0
    %578 = vmatpush2.msra.mxu0 0.0
    %579 = vmatprep.subr.mxu0 0.0
    %580 = vmatpush2.msra.mxu0 0.0
    %581 = vmatprep.subr.mxu0 0.0
    %582 = vmatpush2.msra.mxu0 0.0
    %583 = vmatprep.subr.mxu0 0.0
    %584 = vmatpush2.msra.mxu0 0.0
    %585 = vmatprep.subr.mxu0 0.0
    %586 = vmatpush2.msra.mxu0 0.0
    %587 = vmatprep.mubr.f32.mxu0 0.0
    %588 = vmatmul.mubr.f32.gmra.mxu0 %v450
    %v589 = vpop.f32.mrf.mxu0
    %v590 = vadd.f32 %v446, %v589
    %v591 = vpop.f32.mrf.mxu0
    %v592 = vadd.f32 %v446, %v591
    %593 = vdwg.mxu0
    %v594 = vmax.f32 %v519, 0.0
    %v595 = vmax.f32 %v521, 0.0
    %v596 = vmax.f32 %v590, 0.0
    %v597 = vmax.f32 %v592, 0.0
    %600 = vrot.lane.b32.xlu0 %v594, 17
    %v601 = vpop.permute.xlu0 %600
    %602 = vrot.lane.b32.xlu0 %v595, 17
    %v603 = vpop.permute.xlu0 %602
    %v604 = vsel %vm66, %v601, %v603
    %608 = vst.msk [vmem:[#allocation2] sm:$0xff] %vm82, %v601
    %609 = vst [vmem:[#allocation2 + $0x8] sm:$0xff] %v604
    %610 = vst.msk [vmem:[#allocation2 + $0x10] sm:$0xff] %vm66, %v603
    %v611 = vld [vmem:[#allocation2] sm:$0xff]
    %v612 = vld [vmem:[#allocation2 + $0x8] sm:$0xff]
    %v613 = vsel %vm90, %v611, 0.0
    %v614 = vsel %vm91, %v612, 0.0
    %615 = vst [vmem:[#allocation3] sm:$0xff] %v613
    %616 = vst [vmem:[#allocation3 + $0x8] sm:$0xff] %v614
    %v617 = vld [vmem:[#allocation2] sm:$0xff]
    %v618 = vld [vmem:[#allocation2 + $0x8] sm:$0xff]
    %v619 = vld [vmem:[#allocation2 + $0x10] sm:$0xff]
    %623 = vrot.lane.b32.xlu0 %v617, 127
    %v624 = vpop.permute.xlu0 %623
    %625 = vrot.lane.b32.xlu0 %v618, 127
    %v626 = vpop.permute.xlu0 %625
    %627 = vrot.lane.b32.xlu0 %v619, 127
    %v628 = vpop.permute.xlu0 %627
    %v629 = vsel %vm108, %v624, %v626
    %v630 = vsel %vm108, %v626, %v628
    %633 = vst [vmem:[#allocation3 + $0x20] sm:$0xff] %v629
    %634 = vst [vmem:[#allocation3 + $0x28] sm:$0xff] %v630
    %v635 = vld [vmem:[#allocation2] sm:$0xff]
    %v636 = vld [vmem:[#allocation2 + $0x8] sm:$0xff]
    %v637 = vld [vmem:[#allocation2 + $0x10] sm:$0xff]
    %641 = vrot.lane.b32.xlu0 %v635, 126
    %v642 = vpop.permute.xlu0 %641
    %643 = vrot.lane.b32.xlu0 %v636, 126
    %v644 = vpop.permute.xlu0 %643
    %645 = vrot.lane.b32.xlu0 %v637, 126
    %v646 = vpop.permute.xlu0 %645
    %v647 = vsel %vm131, %v642, %v644
    %v648 = vsel %vm131, %v644, %v646
    %v651 = vsel %vm120, %v647, 0.0
    %v652 = vsel %vm121, %v648, 0.0
    %653 = vst [vmem:[#allocation3 + $0x40] sm:$0xff] %v651
    %654 = vst [vmem:[#allocation3 + $0x48] sm:$0xff] %v652
    %v655 = vld [vmem:[#allocation2] sm:$0xff]
    %v656 = vld [vmem:[#allocation2 + $0x8] sm:$0xff]
    %v657 = vld [vmem:[#allocation2 + $0x10] sm:$0xff]
    %661 = vrot.lane.b32.xlu0 %v655, 112
    %v662 = vpop.permute.xlu0 %661
    %663 = vrot.lane.b32.xlu0 %v656, 112
    %v664 = vpop.permute.xlu0 %663
    %665 = vrot.lane.b32.xlu0 %v657, 112
    %v666 = vpop.permute.xlu0 %665
    %v667 = vsel %vm152, %v662, %v664
    %v668 = vsel %vm152, %v664, %v666
    %v671 = vsel %vm90, %v667, 0.0
    %v672 = vsel %vm91, %v668, 0.0
    %673 = vst [vmem:[#allocation3 + $0x60] sm:$0xff] %v671
    %674 = vst [vmem:[#allocation3 + $0x68] sm:$0xff] %v672
    %675 = vst [vmem:[#allocation3 + $0x80] sm:$0xff] %v594
    %676 = vst [vmem:[#allocation3 + $0x88] sm:$0xff] %v595
    %v677 = vld [vmem:[#allocation2] sm:$0xff]
    %v678 = vld [vmem:[#allocation2 + $0x8] sm:$0xff]
    %v679 = vld [vmem:[#allocation2 + $0x10] sm:$0xff]
    %683 = vrot.lane.b32.xlu0 %v677, 110
    %v684 = vpop.permute.xlu0 %683
    %685 = vrot.lane.b32.xlu0 %v678, 110
    %v686 = vpop.permute.xlu0 %685
    %687 = vrot.lane.b32.xlu0 %v679, 110
    %v688 = vpop.permute.xlu0 %687
    %v689 = vsel %vm175, %v684, %v686
    %v690 = vsel %vm175, %v686, %v688
    %v693 = vsel %vm120, %v689, 0.0
    %v694 = vsel %vm121, %v690, 0.0
    %695 = vst [vmem:[#allocation3 + $0xa0] sm:$0xff] %v693
    %696 = vst [vmem:[#allocation3 + $0xa8] sm:$0xff] %v694
    %v697 = vld [vmem:[#allocation2] sm:$0xff]
    %v698 = vld [vmem:[#allocation2 + $0x8] sm:$0xff]
    %v699 = vld [vmem:[#allocation2 + $0x10] sm:$0xff]
    %703 = vrot.lane.b32.xlu0 %v697, 96
    %v704 = vpop.permute.xlu0 %703
    %705 = vrot.lane.b32.xlu0 %v698, 96
    %v706 = vpop.permute.xlu0 %705
    %707 = vrot.lane.b32.xlu0 %v699, 96
    %v708 = vpop.permute.xlu0 %707
    %v709 = vsel %vm196, %v704, %v706
    %v710 = vsel %vm196, %v706, %v708
    %v713 = vsel %vm90, %v709, 0.0
    %v714 = vsel %vm91, %v710, 0.0
    %715 = vst [vmem:[#allocation3 + $0xc0] sm:$0xff] %v713
    %716 = vst [vmem:[#allocation3 + $0xc8] sm:$0xff] %v714
    %v717 = vld [vmem:[#allocation2] sm:$0xff]
    %v718 = vld [vmem:[#allocation2 + $0x8] sm:$0xff]
    %v719 = vld [vmem:[#allocation2 + $0x10] sm:$0xff]
    %723 = vrot.lane.b32.xlu0 %v717, 95
    %v724 = vpop.permute.xlu0 %723
    %725 = vrot.lane.b32.xlu0 %v718, 95
    %v726 = vpop.permute.xlu0 %725
    %727 = vrot.lane.b32.xlu0 %v719, 95
    %v728 = vpop.permute.xlu0 %727
    %v729 = vsel %vm217, %v724, %v726
    %v730 = vsel %vm217, %v726, %v728
    %733 = vst [vmem:[#allocation3 + $0xe0] sm:$0xff] %v729
    %734 = vst [vmem:[#allocation3 + $0xe8] sm:$0xff] %v730
    %v735 = vld [vmem:[#allocation2] sm:$0xff]
    %v736 = vld [vmem:[#allocation2 + $0x8] sm:$0xff]
    %v737 = vld [vmem:[#allocation2 + $0x10] sm:$0xff]
    %741 = vrot.lane.b32.xlu0 %v735, 94
    %v742 = vpop.permute.xlu0 %741
    %743 = vrot.lane.b32.xlu0 %v736, 94
    %v744 = vpop.permute.xlu0 %743
    %745 = vrot.lane.b32.xlu0 %v737, 94
    %v746 = vpop.permute.xlu0 %745
    %v747 = vsel %vm236, %v742, %v744
    %v748 = vsel %vm236, %v744, %v746
    %v751 = vsel %vm120, %v747, 0.0
    %v752 = vsel %vm121, %v748, 0.0
    %753 = vst [vmem:[#allocation3 + $0x100] sm:$0xff] %v751
    %754 = vst [vmem:[#allocation3 + $0x108] sm:$0xff] %v752
    %757 = vrot.lane.b32.xlu0 %v596, 17
    %v758 = vpop.permute.xlu0 %757
    %759 = vrot.lane.b32.xlu0 %v597, 17
    %v760 = vpop.permute.xlu0 %759
    %v761 = vsel %vm66, %v758, %v760
    %765 = vst.msk [vmem:[#allocation2] sm:$0xff] %vm82, %v758
    %766 = vst [vmem:[#allocation2 + $0x8] sm:$0xff] %v761
    %767 = vst.msk [vmem:[#allocation2 + $0x10] sm:$0xff] %vm66, %v760
    %v768 = vld [vmem:[#allocation2] sm:$0xff]
    %v769 = vld [vmem:[#allocation2 + $0x8] sm:$0xff]
    %v770 = vsel %vm90, %v768, 0.0
    %v771 = vsel %vm91, %v769, 0.0
    %772 = vst [vmem:[#allocation3 + $0x10] sm:$0xff] %v770
    %773 = vst [vmem:[#allocation3 + $0x18] sm:$0xff] %v771
    %v774 = vld [vmem:[#allocation2] sm:$0xff]
    %v775 = vld [vmem:[#allocation2 + $0x8] sm:$0xff]
    %v776 = vld [vmem:[#allocation2 + $0x10] sm:$0xff]
    %780 = vrot.lane.b32.xlu0 %v774, 127
    %v781 = vpop.permute.xlu0 %780
    %782 = vrot.lane.b32.xlu0 %v775, 127
    %v783 = vpop.permute.xlu0 %782
    %784 = vrot.lane.b32.xlu0 %v776, 127
    %v785 = vpop.permute.xlu0 %784
    %v786 = vsel %vm108, %v781, %v783
    %v787 = vsel %vm108, %v783, %v785
    %790 = vst [vmem:[#allocation3 + $0x30] sm:$0xff] %v786
    %791 = vst [vmem:[#allocation3 + $0x38] sm:$0xff] %v787
    %v792 = vld [vmem:[#allocation2] sm:$0xff]
    %v793 = vld [vmem:[#allocation2 + $0x8] sm:$0xff]
    %v794 = vld [vmem:[#allocation2 + $0x10] sm:$0xff]
    %798 = vrot.lane.b32.xlu0 %v792, 126
    %v799 = vpop.permute.xlu0 %798
    %800 = vrot.lane.b32.xlu0 %v793, 126
    %v801 = vpop.permute.xlu0 %800
    %802 = vrot.lane.b32.xlu0 %v794, 126
    %v803 = vpop.permute.xlu0 %802
    %v804 = vsel %vm131, %v799, %v801
    %v805 = vsel %vm131, %v801, %v803
    %v808 = vsel %vm120, %v804, 0.0
    %v809 = vsel %vm121, %v805, 0.0
    %810 = vst [vmem:[#allocation3 + $0x50] sm:$0xff] %v808
    %811 = vst [vmem:[#allocation3 + $0x58] sm:$0xff] %v809
    %v812 = vld [vmem:[#allocation2] sm:$0xff]
    %v813 = vld [vmem:[#allocation2 + $0x8] sm:$0xff]
    %v814 = vld [vmem:[#allocation2 + $0x10] sm:$0xff]
    %818 = vrot.lane.b32.xlu0 %v812, 112
    %v819 = vpop.permute.xlu0 %818
    %820 = vrot.lane.b32.xlu0 %v813, 112
    %v821 = vpop.permute.xlu0 %820
    %822 = vrot.lane.b32.xlu0 %v814, 112
    %v823 = vpop.permute.xlu0 %822
    %v824 = vsel %vm152, %v819, %v821
    %v825 = vsel %vm152, %v821, %v823
    %v828 = vsel %vm90, %v824, 0.0
    %v829 = vsel %vm91, %v825, 0.0
    %830 = vst [vmem:[#allocation3 + $0x70] sm:$0xff] %v828
    %831 = vst [vmem:[#allocation3 + $0x78] sm:$0xff] %v829
    %832 = vst [vmem:[#allocation3 + $0x90] sm:$0xff] %v596
    %833 = vst [vmem:[#allocation3 + $0x98] sm:$0xff] %v597
    %v834 = vld [vmem:[#allocation2] sm:$0xff]
    %v835 = vld [vmem:[#allocation2 + $0x8] sm:$0xff]
    %v836 = vld [vmem:[#allocation2 + $0x10] sm:$0xff]
    %840 = vrot.lane.b32.xlu0 %v834, 110
    %v841 = vpop.permute.xlu0 %840
    %842 = vrot.lane.b32.xlu0 %v835, 110
    %v843 = vpop.permute.xlu0 %842
    %844 = vrot.lane.b32.xlu0 %v836, 110
    %v845 = vpop.permute.xlu0 %844
    %v846 = vsel %vm175, %v841, %v843
    %v847 = vsel %vm175, %v843, %v845
    %v850 = vsel %vm120, %v846, 0.0
    %v851 = vsel %vm121, %v847, 0.0
    %852 = vst [vmem:[#allocation3 + $0xb0] sm:$0xff] %v850
    %853 = vst [vmem:[#allocation3 + $0xb8] sm:$0xff] %v851
    %v854 = vld [vmem:[#allocation2] sm:$0xff]
    %v855 = vld [vmem:[#allocation2 + $0x8] sm:$0xff]
    %v856 = vld [vmem:[#allocation2 + $0x10] sm:$0xff]
    %860 = vrot.lane.b32.xlu0 %v854, 96
    %v861 = vpop.permute.xlu0 %860
    %862 = vrot.lane.b32.xlu0 %v855, 96
    %v863 = vpop.permute.xlu0 %862
    %864 = vrot.lane.b32.xlu0 %v856, 96
    %v865 = vpop.permute.xlu0 %864
    %v866 = vsel %vm196, %v861, %v863
    %v867 = vsel %vm196, %v863, %v865
    %v870 = vsel %vm90, %v866, 0.0
    %v871 = vsel %vm91, %v867, 0.0
    %872 = vst [vmem:[#allocation3 + $0xd0] sm:$0xff] %v870
    %873 = vst [vmem:[#allocation3 + $0xd8] sm:$0xff] %v871
    %v874 = vld [vmem:[#allocation2] sm:$0xff]
    %v875 = vld [vmem:[#allocation2 + $0x8] sm:$0xff]
    %v876 = vld [vmem:[#allocation2 + $0x10] sm:$0xff]
    %880 = vrot.lane.b32.xlu0 %v874, 95
    %v881 = vpop.permute.xlu0 %880
    %882 = vrot.lane.b32.xlu0 %v875, 95
    %v883 = vpop.permute.xlu0 %882
    %884 = vrot.lane.b32.xlu0 %v876, 95
    %v885 = vpop.permute.xlu0 %884
    %v886 = vsel %vm217, %v881, %v883
    %v887 = vsel %vm217, %v883, %v885
    %890 = vst [vmem:[#allocation3 + $0xf0] sm:$0xff] %v886
    %891 = vst [vmem:[#allocation3 + $0xf8] sm:$0xff] %v887
    %v892 = vld [vmem:[#allocation2] sm:$0xff]
    %v893 = vld [vmem:[#allocation2 + $0x8] sm:$0xff]
    %v894 = vld [vmem:[#allocation2 + $0x10] sm:$0xff]
    %898 = vrot.lane.b32.xlu0 %v892, 94
    %v899 = vpop.permute.xlu0 %898
    %900 = vrot.lane.b32.xlu0 %v893, 94
    %v901 = vpop.permute.xlu0 %900
    %902 = vrot.lane.b32.xlu0 %v894, 94
    %v903 = vpop.permute.xlu0 %902
    %v904 = vsel %vm236, %v899, %v901
    %v905 = vsel %vm236, %v901, %v903
    %v908 = vsel %vm120, %v904, 0.0
    %v909 = vsel %vm121, %v905, 0.0
    %910 = vst [vmem:[#allocation3 + $0x110] sm:$0xff] %v908
    %911 = vst [vmem:[#allocation3 + $0x118] sm:$0xff] %v909
    %v912 = vld [vmem:[%s3] sm:$0xff]
    %v913 = vld [vmem:[#allocation3] sm:$0xff]
    %v914 = vld [vmem:[#allocation3 + $0x8] sm:$0xff]
    %v915 = vld [vmem:[#allocation3 + $0x10] sm:$0xff]
    %v916 = vld [vmem:[#allocation3 + $0x18] sm:$0xff]
    %v917 = vld [vmem:[#allocation3 + $0x20] sm:$0xff]
    %v918 = vld [vmem:[#allocation3 + $0x28] sm:$0xff]
    %v919 = vld [vmem:[#allocation3 + $0x30] sm:$0xff]
    %v920 = vld [vmem:[#allocation3 + $0x38] sm:$0xff]
    %v921 = vld [vmem:[#allocation3 + $0x40] sm:$0xff]
    %v922 = vld [vmem:[#allocation3 + $0x48] sm:$0xff]
    %v923 = vld [vmem:[#allocation3 + $0x50] sm:$0xff]
    %v924 = vld [vmem:[#allocation3 + $0x58] sm:$0xff]
    %v925 = vld [vmem:[#allocation3 + $0x60] sm:$0xff]
    %v926 = vld [vmem:[#allocation3 + $0x68] sm:$0xff]
    %v927 = vld [vmem:[#allocation3 + $0x70] sm:$0xff]
    %v928 = vld [vmem:[#allocation3 + $0x78] sm:$0xff]
    %v929 = vld [vmem:[#allocation3 + $0x80] sm:$0xff]
    %v930 = vld [vmem:[#allocation3 + $0x88] sm:$0xff]
    %v931 = vld [vmem:[#allocation3 + $0x90] sm:$0xff]
    %v932 = vld [vmem:[#allocation3 + $0x98] sm:$0xff]
    %v933 = vld [vmem:[#allocation3 + $0xa0] sm:$0xff]
    %v934 = vld [vmem:[#allocation3 + $0xa8] sm:$0xff]
    %v935 = vld [vmem:[#allocation3 + $0xb0] sm:$0xff]
    %v936 = vld [vmem:[#allocation3 + $0xb8] sm:$0xff]
    %v937 = vld [vmem:[#allocation3 + $0xc0] sm:$0xff]
    %v938 = vld [vmem:[#allocation3 + $0xc8] sm:$0xff]
    %v939 = vld [vmem:[#allocation3 + $0xd0] sm:$0xff]
    %v940 = vld [vmem:[#allocation3 + $0xd8] sm:$0xff]
    %v941 = vld [vmem:[#allocation3 + $0xe0] sm:$0xff]
    %v942 = vld [vmem:[#allocation3 + $0xe8] sm:$0xff]
    %v943 = vld [vmem:[#allocation3 + $0xf0] sm:$0xff]
    %v944 = vld [vmem:[#allocation3 + $0xf8] sm:$0xff]
    %v945 = vld [vmem:[#allocation3 + $0x100] sm:$0xff]
    %v946 = vld [vmem:[#allocation3 + $0x108] sm:$0xff]
    %v947 = vld [vmem:[#allocation3 + $0x110] sm:$0xff]
    %v948 = vld [vmem:[#allocation3 + $0x118] sm:$0xff]
    %v949 = vld [vmem:[%s4] sm:$0xff]
    %951 = vset.pattern.permute.xlu0 0
    %952 = vperm.xlu0 %951, %v949
    %v953 = vpop.permute.xlu0 %952
    %v956 = vsel %vm448, %v912, 0
    %958 = vmatprep.subr.mxu0 0.0
    %959 = vmatpush1.msra.mxu0 0.0
    %960 = vmatprep.subr.mxu0 0.0
    %961 = vmatpush1.msra.mxu0 0.0
    %962 = vmatprep.subr.mxu0 0.0
    %963 = vmatpush1.msra.mxu0 0.0
    %964 = vmatprep.subr.mxu0 0.0
    %965 = vmatpush1.msra.mxu0 0.0
    %966 = vmatprep.subr.mxu0 0.0
    %967 = vmatpush1.msra.mxu0 0.0
    %968 = vmatprep.subr.mxu0 0.0
    %969 = vmatpush1.msra.mxu0 0.0
    %970 = vmatprep.subr.mxu0 0.0
    %971 = vmatpush1.msra.mxu0 0.0
    %972 = vmatprep.subr.mxu0 %v946
    %973 = vmatpush1.msra.mxu0 %v945
    %974 = vmatprep.subr.mxu0 %v942
    %975 = vmatpush1.msra.mxu0 %v941
    %976 = vmatprep.subr.mxu0 %v938
    %977 = vmatpush1.msra.mxu0 %v937
    %978 = vmatprep.subr.mxu0 %v934
    %979 = vmatpush1.msra.mxu0 %v933
    %980 = vmatprep.subr.mxu0 %v930
    %981 = vmatpush1.msra.mxu0 %v929
    %982 = vmatprep.subr.mxu0 %v926
    %983 = vmatpush1.msra.mxu0 %v925
    %984 = vmatprep.subr.mxu0 %v922
    %985 = vmatpush1.msra.mxu0 %v921
    %986 = vmatprep.subr.mxu0 %v918
    %987 = vmatpush1.msra.mxu0 %v917
    %988 = vmatprep.subr.mxu0 %v914
    %989 = vmatpush1.msra.mxu0 %v913
    %990 = vmatprep.subr.mxu0 0.0
    %991 = vmatpush2.msra.mxu0 0.0
    %992 = vmatprep.subr.mxu0 0.0
    %993 = vmatpush2.msra.mxu0 0.0
    %994 = vmatprep.subr.mxu0 0.0
    %995 = vmatpush2.msra.mxu0 0.0
    %996 = vmatprep.subr.mxu0 0.0
    %997 = vmatpush2.msra.mxu0 0.0
    %998 = vmatprep.subr.mxu0 0.0
    %999 = vmatpush2.msra.mxu0 0.0
    %1000 = vmatprep.subr.mxu0 0.0
    %1001 = vmatpush2.msra.mxu0 0.0
    %1002 = vmatprep.subr.mxu0 0.0
    %1003 = vmatpush2.msra.mxu0 0.0
    %1004 = vmatprep.subr.mxu0 0.0
    %1005 = vmatpush2.msra.mxu0 0.0
    %1006 = vmatprep.subr.mxu0 0.0
    %1007 = vmatpush2.msra.mxu0 0.0
    %1008 = vmatprep.subr.mxu0 0.0
    %1009 = vmatpush2.msra.mxu0 0.0
    %1010 = vmatprep.subr.mxu0 0.0
    %1011 = vmatpush2.msra.mxu0 0.0
    %1012 = vmatprep.subr.mxu0 0.0
    %1013 = vmatpush2.msra.mxu0 0.0
    %1014 = vmatprep.subr.mxu0 0.0
    %1015 = vmatpush2.msra.mxu0 0.0
    %1016 = vmatprep.subr.mxu0 0.0
    %1017 = vmatpush2.msra.mxu0 0.0
    %1018 = vmatprep.subr.mxu0 0.0
    %1019 = vmatpush2.msra.mxu0 0.0
    %1020 = vmatprep.subr.mxu0 0.0
    %1021 = vmatpush2.msra.mxu0 0.0
    %1022 = vmatprep.mubr.f32.mxu0 0.0
    %1023 = vmatmul.mubr.f32.gmra.mxu0 %v956
    %v1024 = vpop.f32.mrf.mxu0
    %v1025 = vadd.f32 %v953, %v1024
    %v1026 = vpop.f32.mrf.mxu0
    %v1027 = vadd.f32 %v953, %v1026
    %1028 = vdwg.mxu0
    %1029 = vmatprep.subr.mxu0 0.0
    %1030 = vmatpush1.msra.mxu0 0.0
    %1031 = vmatprep.subr.mxu0 0.0
    %1032 = vmatpush1.msra.mxu0 0.0
    %1033 = vmatprep.subr.mxu0 0.0
    %1034 = vmatpush1.msra.mxu0 0.0
    %1035 = vmatprep.subr.mxu0 0.0
    %1036 = vmatpush1.msra.mxu0 0.0
    %1037 = vmatprep.subr.mxu0 0.0
    %1038 = vmatpush1.msra.mxu0 0.0
    %1039 = vmatprep.subr.mxu0 0.0
    %1040 = vmatpush1.msra.mxu0 0.0
    %1041 = vmatprep.subr.mxu0 0.0
    %1042 = vmatpush1.msra.mxu0 0.0
    %1043 = vmatprep.subr.mxu0 %v948
    %1044 = vmatpush1.msra.mxu0 %v947
    %1045 = vmatprep.subr.mxu0 %v944
    %1046 = vmatpush1.msra.mxu0 %v943
    %1047 = vmatprep.subr.mxu0 %v940
    %1048 = vmatpush1.msra.mxu0 %v939
    %1049 = vmatprep.subr.mxu0 %v936
    %1050 = vmatpush1.msra.mxu0 %v935
    %1051 = vmatprep.subr.mxu0 %v932
    %1052 = vmatpush1.msra.mxu0 %v931
    %1053 = vmatprep.subr.mxu0 %v928
    %1054 = vmatpush1.msra.mxu0 %v927
    %1055 = vmatprep.subr.mxu0 %v924
    %1056 = vmatpush1.msra.mxu0 %v923
    %1057 = vmatprep.subr.mxu0 %v920
    %1058 = vmatpush1.msra.mxu0 %v919
    %1059 = vmatprep.subr.mxu0 %v916
    %1060 = vmatpush1.msra.mxu0 %v915
    %1061 = vmatprep.subr.mxu0 0.0
    %1062 = vmatpush2.msra.mxu0 0.0
    %1063 = vmatprep.subr.mxu0 0.0
    %1064 = vmatpush2.msra.mxu0 0.0
    %1065 = vmatprep.subr.mxu0 0.0
    %1066 = vmatpush2.msra.mxu0 0.0
    %1067 = vmatprep.subr.mxu0 0.0
    %1068 = vmatpush2.msra.mxu0 0.0
    %1069 = vmatprep.subr.mxu0 0.0
    %1070 = vmatpush2.msra.mxu0 0.0
    %1071 = vmatprep.subr.mxu0 0.0
    %1072 = vmatpush2.msra.mxu0 0.0
    %1073 = vmatprep.subr.mxu0 0.0
    %1074 = vmatpush2.msra.mxu0 0.0
    %1075 = vmatprep.subr.mxu0 0.0
    %1076 = vmatpush2.msra.mxu0 0.0
    %1077 = vmatprep.subr.mxu0 0.0
    %1078 = vmatpush2.msra.mxu0 0.0
    %1079 = vmatprep.subr.mxu0 0.0
    %1080 = vmatpush2.msra.mxu0 0.0
    %1081 = vmatprep.subr.mxu0 0.0
    %1082 = vmatpush2.msra.mxu0 0.0
    %1083 = vmatprep.subr.mxu0 0.0
    %1084 = vmatpush2.msra.mxu0 0.0
    %1085 = vmatprep.subr.mxu0 0.0
    %1086 = vmatpush2.msra.mxu0 0.0
    %1087 = vmatprep.subr.mxu0 0.0
    %1088 = vmatpush2.msra.mxu0 0.0
    %1089 = vmatprep.subr.mxu0 0.0
    %1090 = vmatpush2.msra.mxu0 0.0
    %1091 = vmatprep.subr.mxu0 0.0
    %1092 = vmatpush2.msra.mxu0 0.0
    %1093 = vmatprep.mubr.f32.mxu0 0.0
    %1094 = vmatmul.mubr.f32.gmra.mxu0 %v956
    %v1095 = vpop.f32.mrf.mxu0
    %v1096 = vadd.f32 %v953, %v1095
    %v1097 = vpop.f32.mrf.mxu0
    %v1098 = vadd.f32 %v953, %v1097
    %1099 = vdwg.mxu0
    %v1100 = vld [vmem:[#allocation4] sm:$0xff]
    %v1101 = vld [vmem:[#allocation4 + $0x8] sm:$0xff]
    %v1102 = vmul.f32 %v1025, 0.5
    %v1103 = vmul.f32 %v1027, 0.5
    %v1104 = vadd.f32 %v1100, %v1102
    %v1105 = vadd.f32 %v1101, %v1103
    %1106 = vst [vmem:[#allocation7] sm:$0xff] %v1104
    %1107 = vst [vmem:[#allocation7 + $0x8] sm:$0xff] %v1105
    %v1108 = vld [vmem:[%s245] sm:$0xff]
    %v1109 = vld [vmem:[%s245 + $0x8] sm:$0xff]
    %v1110 = vmul.f32 %v1096, 0.5
    %v1111 = vmul.f32 %v1098, 0.5
    %v1112 = vadd.f32 %v1108, %v1110
    %v1113 = vadd.f32 %v1109, %v1111
    %s1114 = scalar_lea.vmem [#allocation7], 16
    %1115 = vst [vmem:[%s1114] sm:$0xff] %v1112
    %1116 = vst [vmem:[%s1114 + $0x8] sm:$0xff] %v1113
    // Predicated region
    $region26: #{tpu_custom_call.1} parent=1 // pred_check
      _
    $region27: #{tpu_custom_call.1} parent=1 // pred_check_branch
      %1118 = sbr.rel (0) target = $region29
    $region28: #{tpu_custom_call.1} parent=1 // pred_region
      %s1120 = ssub.s32 512, 512
      %1121 = vsyncadd [#allocation6], %s1120
      %s1122 = sshll.u32 [#allocation7], 4
      %s1123 = int_to_ptr.vmem [resolvable:$true] %s1122
      %1128 = dma.vmem_to_hbm [thread:$0]  %s1123, 512, %s5, [#allocation6], 256, 256, 16
    $region29: #{tpu_custom_call.1} parent=1 // pred_fallthru
      _
    // Predicated region
    $region30: #{tpu_custom_call.1} parent=1 // pred_check
      _
    $region31: #{tpu_custom_call.1} parent=1 // pred_check_branch
      %1130 = sbr.rel (0) target = $region33
    $region32: #{tpu_custom_call.1} parent=1 // pred_region
      %1131 = dma.done [#allocation6], 512
    $region33: #{tpu_custom_call.1} parent=1 // pred_fallthru
      _
    %1132 = vsyncpa [#allocation5], 1
    %1133 = vsyncpa [#allocation6], 1

</llo_original>
